<compile_context>
chip_gen: v5e
topology: v5e:2x2
jax: 0.10.0
libtpu: 0.0.40
codegen_flags: <defaults>
</compile_context>

<pallas_src>
import functools

import jax
import jax.numpy as jnp
import numpy as np
from jax import lax
from jax.experimental import pallas as pl
from jax.experimental.pallas import tpu as pltpu


def _round_up(x, m):
    return ((x + m - 1) // m) * m


# ----------------------------------------------------------------------------
# Pallas kernel: one streamed T-chunk of the GRU recurrence.
#   x_ref   : (Tc*Bp, Hp)    bf16  embedded inputs, time-major, flattened rows
#   wih_ref : (Hp, 3*Hp)     bf16  input->gates weights (per-gate lane-aligned)
#   whh_ref : (Hp, 3*Hp)     bf16  hidden->gates weights
#   bi_ref  : (1, 3*Hp)      f32   bias_ih (+ bias_hh fused for r,z gates)
#   bhn_ref : (1, Hp)        f32   bias_hh for the n gate (needed inside r*(...))
#   out_ref : (Tc*Bp, Hp)    f32   per-step hidden states
#   gi_ref  : (Tc*Bp, 3*Hp)  f32   scratch: precomputed input projection
#   h_ref   : (Bp, Hp)       f32   scratch: hidden state carried across chunks
# ----------------------------------------------------------------------------
def gru_kernel(x_ref, wih_ref, whh_ref, bi_ref, bhn_ref, out_ref,
               gi_ref, h_ref, *, tc, bp, hp):
    @pl.when(pl.program_id(0) == 0)
    def _init():
        h_ref[...] = jnp.zeros_like(h_ref)

    # Pass 1: input projection for every timestep of this chunk at once.
    # One (Tc*Bp, Hp) x (Hp, 3Hp) bf16 matmul (good MXU row occupancy) instead
    # of Tc tiny matmuls on the serial critical path.  r/z hidden biases are
    # pre-fused into bi_ref.
    gi_ref[...] = (
        jnp.dot(x_ref[...], wih_ref[...], preferred_element_type=jnp.float32)
        + bi_ref[...])

    whh = whh_ref[...]                                    # resident bf16 weights
    bhn = jnp.broadcast_to(bhn_ref[...], (bp, hp))        # hoisted broadcast

    def step(t, h):
        row = pl.multiple_of(t * bp, bp)                  # sublane-aligned start
        gi = gi_ref[pl.ds(row, bp), :]                    # (Bp, 3Hp) f32
        gh = jnp.dot(h.astype(jnp.bfloat16), whh,
                     preferred_element_type=jnp.float32)  # (Bp, 3Hp) f32
        # PyTorch GRU gate ordering: r, z, n; gate blocks are lane-aligned.
        r = jax.nn.sigmoid(gi[:, 0:hp] + gh[:, 0:hp])
        z = jax.nn.sigmoid(gi[:, hp:2 * hp] + gh[:, hp:2 * hp])
        n = jnp.tanh(gi[:, 2 * hp:3 * hp] + r * (gh[:, 2 * hp:3 * hp] + bhn))
        h_new = (1.0 - z) * n + z * h                     # all-f32 gate math
        out_ref[pl.ds(row, bp), :] = h_new                # lane-dense f32 store
        return h_new

    h_final = lax.fori_loop(0, tc, step, h_ref[...],
                            unroll=True if tc <= 16 else 8)
    h_ref[...] = h_final


def gru_pallas(x_2d, wih, whh, bi, bhn, *, t_pad, tc, bp, hp):
    """x_2d: (Tp*Bp, Hp) bf16. Returns per-step hidden states (Tp*Bp, Hp) f32."""
    num_chunks = t_pad // tc
    kernel = functools.partial(gru_kernel, tc=tc, bp=bp, hp=hp)
    return pl.pallas_call(
        kernel,
        out_shape=jax.ShapeDtypeStruct((t_pad * bp, hp), jnp.float32),
        grid_spec=pltpu.PrefetchScalarGridSpec(
            num_scalar_prefetch=0,
            grid=(num_chunks,),
            in_specs=[
                pl.BlockSpec((tc * bp, hp), lambda c: (c, 0)),    # x chunk (streamed)
                pl.BlockSpec((hp, 3 * hp), lambda c: (0, 0)),     # Wih (pinned)
                pl.BlockSpec((hp, 3 * hp), lambda c: (0, 0)),     # Whh (pinned)
                pl.BlockSpec((1, 3 * hp), lambda c: (0, 0)),      # fused bias
                pl.BlockSpec((1, hp), lambda c: (0, 0)),          # bhh_n
            ],
            out_specs=pl.BlockSpec((tc * bp, hp), lambda c: (c, 0)),
            scratch_shapes=[
                pltpu.VMEM((tc * bp, 3 * hp), jnp.float32),       # gi scratch
                pltpu.VMEM((bp, hp), jnp.float32),                # carried h
            ],
        ),
        compiler_params=pltpu.CompilerParams(
            # Time is inherently serial -> the single grid axis is sequential.
            # TODO(synk): for realistic B (>=16) add a leading "parallel" batch
            # axis so v7x's two TensorCores split independent sequences.
            dimension_semantics=("arbitrary",),
            vmem_limit_bytes=48 * 1024 * 1024,
        ),
    )(x_2d, wih, whh, bi, bhn)


# ----------------------------------------------------------------------------
# EncoderRNN forward (glue + kernel call)
# ----------------------------------------------------------------------------
def init_params(key, input_size, hidden_size):
    k_emb, k_wih, k_whh, k_bih, k_bhh = jax.random.split(key, 5)
    bound = 1.0 / np.sqrt(hidden_size)
    return {
        # nn.Embedding(input_size, hidden_size): N(0, 1)
        "embedding": jax.random.normal(k_emb, (input_size, hidden_size), jnp.float32),
        # nn.GRU(hidden_size, hidden_size): U(-1/sqrt(H), 1/sqrt(H))
        "weight_ih": jax.random.uniform(k_wih, (3 * hidden_size, hidden_size),
                                        jnp.float32, -bound, bound),
        "weight_hh": jax.random.uniform(k_whh, (3 * hidden_size, hidden_size),
                                        jnp.float32, -bound, bound),
        "bias_ih": jax.random.uniform(k_bih, (3 * hidden_size,), jnp.float32, -bound, bound),
        "bias_hh": jax.random.uniform(k_bhh, (3 * hidden_size,), jnp.float32, -bound, bound),
    }


@jax.jit
def encoder_rnn_forward(input_ids, params):
    """input_ids: (B, T) int32. Returns (output (B, T, H), hidden (1, B, H))."""
    B, T = input_ids.shape
    H = params["embedding"].shape[1]
    Hp = _round_up(H, 128)          # lane-pad hidden size
    Bp = _round_up(B, 8)            # sublane-pad batch
    Tc = min(max(T, 1), 128)        # timesteps per streamed chunk
    Tp = _round_up(T, Tc)

    # --- glue: embedding gather, dropout (inference identity), layout -------
    embedded = jnp.take(params["embedding"], input_ids, axis=0)      # (B, T, H)
    # TODO(synk): training-mode dropout(p=0.1) mask not implemented (eval-mode identity).
    x_tbh = jnp.transpose(embedded, (1, 0, 2))                       # (T, B, H)
    x_pad = jnp.zeros((Tp, Bp, Hp), jnp.bfloat16)
    x_pad = x_pad.at[:T, :B, :H].set(x_tbh.astype(jnp.bfloat16))
    x_2d = x_pad.reshape(Tp * Bp, Hp)

    # --- glue: pad + lane-align weights per gate, fuse biases ----------------
    wih_p = jnp.zeros((Hp, 3 * Hp), jnp.float32)
    whh_p = jnp.zeros((Hp, 3 * Hp), jnp.float32)
    bi_p = jnp.zeros((1, 3 * Hp), jnp.float32)
    bhn_p = jnp.zeros((1, Hp), jnp.float32)
    for g in range(3):  # gates r, z, n placed at lane-aligned offsets g*Hp
        wih_p = wih_p.at[:H, g * Hp:g * Hp + H].set(
            params["weight_ih"][g * H:(g + 1) * H, :].T)
        whh_p = whh_p.at[:H, g * Hp:g * Hp + H].set(
            params["weight_hh"][g * H:(g + 1) * H, :].T)
        bias = params["bias_ih"][g * H:(g + 1) * H]
        if g < 2:  # bias_hh for r,z can be fused into the precomputed gi
            bias = bias + params["bias_hh"][g * H:(g + 1) * H]
        bi_p = bi_p.at[0, g * Hp:g * Hp + H].set(bias)
    bhn_p = bhn_p.at[0, :H].set(params["bias_hh"][2 * H:3 * H])

    out_2d = gru_pallas(x_2d,
                        wih_p.astype(jnp.bfloat16),
                        whh_p.astype(jnp.bfloat16),
                        bi_p, bhn_p,
                        t_pad=Tp, tc=Tc, bp=Bp, hp=Hp)

    out_tbh = out_2d.reshape(Tp, Bp, Hp)[:T, :B, :H]   # strip padding
    output = jnp.transpose(out_tbh, (1, 0, 2))          # batch_first (B, T, H)
    hidden = out_tbh[T - 1][None]                       # (1, B, H) = last step
    return output, hidden


# ----------------------------------------------------------------------------
# Pure-JAX f32 reference (PyTorch semantics) for a correctness sanity check
# ----------------------------------------------------------------------------
def encoder_rnn_reference(input_ids, params):
    H = params["embedding"].shape[1]
    embedded = jnp.take(params["embedding"], input_ids, axis=0)  # (B, T, H)
    x_tbh = jnp.transpose(embedded, (1, 0, 2))
    wih_t, whh_t = params["weight_ih"].T, params["weight_hh"].T
    bih, bhh = params["bias_ih"], params["bias_hh"]
    B = input_ids.shape[0]

    def step(h, x_t):
        gi = x_t @ wih_t + bih
        gh = h @ whh_t + bhh
        r = jax.nn.sigmoid(gi[:, 0:H] + gh[:, 0:H])
        z = jax.nn.sigmoid(gi[:, H:2 * H] + gh[:, H:2 * H])
        n = jnp.tanh(gi[:, 2 * H:3 * H] + r * gh[:, 2 * H:3 * H])
        h_new = (1.0 - z) * n + z * h
        return h_new, h_new

    h0 = jnp.zeros((B, H), jnp.float32)
    h_final, out_tbh = lax.scan(step, h0, x_tbh)
    return jnp.transpose(out_tbh, (1, 0, 2)), h_final[None]


if __name__ == "__main__":
    INPUT_SIZE = 50   # vocab size
    HIDDEN = 32
    BATCH = 2
    SEQ = 8

    key = jax.random.PRNGKey(0)
    k_params, k_ids = jax.random.split(key)
    params = init_params(k_params, INPUT_SIZE, HIDDEN)
    input_ids = jax.random.randint(k_ids, (BATCH, SEQ), 0, INPUT_SIZE, dtype=jnp.int32)

    output, hidden = encoder_rnn_forward(input_ids, params)
    jax.block_until_ready((output, hidden))

    ref_out, ref_hid = encoder_rnn_reference(input_ids, params)
    # bf16 matmul operands (f32 accumulation) vs the pure-f32 reference.
    np.testing.assert_allclose(np.asarray(output), np.asarray(ref_out),
                               rtol=5e-2, atol=5e-2)
    np.testing.assert_allclose(np.asarray(hidden), np.asarray(ref_hid),
                               rtol=5e-2, atol=5e-2)

    assert output.shape == (BATCH, SEQ, HIDDEN)
    assert hidden.shape == (1, BATCH, HIDDEN)
    print("KERNEL_OK")
</pallas_src>

<mosaic_0001>
module attributes {stable_mosaic.version = 11 : i64} {
  func.func @gru_kernel(%arg0: i32, %arg1: memref<64x128xbf16, #tpu.memory_space<vmem>>, %arg2: memref<128x384xbf16, #tpu.memory_space<vmem>>, %arg3: memref<128x384xbf16, #tpu.memory_space<vmem>>, %arg4: memref<1x384xf32, #tpu.memory_space<vmem>>, %arg5: memref<1x128xf32, #tpu.memory_space<vmem>>, %arg6: memref<64x128xf32, #tpu.memory_space<vmem>>, %arg7: memref<64x384xf32, #tpu.memory_space<vmem>>, %arg8: memref<8x128xf32, #tpu.memory_space<vmem>>) attributes {dimension_semantics = [#tpu.dimension_semantics<arbitrary>], iteration_bounds = array<i64: 1>, scalar_prefetch = 0 : i64, scratch_operands = 2 : i64, tpu.core_type = #tpu.core_type<tc>, window_params = [{transform_indices = @transform_0, window_bounds = array<i64: 64, 128>}, {pipeline_mode = #tpu.pipeline_mode<synchronous>, transform_indices = @transform_1, window_bounds = array<i64: 128, 384>}, {pipeline_mode = #tpu.pipeline_mode<synchronous>, transform_indices = @transform_2, window_bounds = array<i64: 128, 384>}, {pipeline_mode = #tpu.pipeline_mode<synchronous>, transform_indices = @transform_3, window_bounds = array<i64: 1, 384>}, {pipeline_mode = #tpu.pipeline_mode<synchronous>, transform_indices = @transform_4, window_bounds = array<i64: 1, 128>}, {transform_indices = @transform_5, window_bounds = array<i64: 64, 128>}]} {
    %c0_i32 = arith.constant 0 : i32
    %0 = arith.cmpi eq, %arg0, %c0_i32 : i32
    %1 = arith.extui %0 : i1 to i32
    %c0_i32_0 = arith.constant 0 : i32
    %2 = arith.cmpi ne, %1, %c0_i32_0 : i32
    scf.if %2 {
      %cst_73 = arith.constant 0.000000e+00 : f32
      %296 = vector.broadcast %cst_73 : f32 to vector<8x128xf32>
      %c0_74 = arith.constant 0 : index
      %c0_75 = arith.constant 0 : index
      %297 = vector.load %arg8[%c0_74, %c0_75] : memref<8x128xf32, #tpu.memory_space<vmem>>, vector<8x128xf32>
      tpu.vector_store %arg8[%c0_74, %c0_75], %296 {strides = array<i32>} : memref<8x128xf32, #tpu.memory_space<vmem>>, vector<8x128xf32>,
    } else {
    }
    %c0 = arith.constant 0 : index
    %c0_1 = arith.constant 0 : index
    %3 = vector.load %arg1[%c0, %c0_1] : memref<64x128xbf16, #tpu.memory_space<vmem>>, vector<64x128xbf16>
    %c0_2 = arith.constant 0 : index
    %c0_3 = arith.constant 0 : index
    %4 = vector.load %arg2[%c0_2, %c0_3] : memref<128x384xbf16, #tpu.memory_space<vmem>>, vector<128x384xbf16>
    %cst = arith.constant dense<0.000000e+00> : vector<64x384xf32>
    %5 = tpu.matmul %3, %4, %cst {dimension_numbers = #tpu.dot_dimension_numbers<[1], [0], [0], [1], [0, 0, 1, 1], [], []>} : vector<64x128xbf16>, vector<128x384xbf16>, vector<64x384xf32> -> vector<64x384xf32>
    %c0_4 = arith.constant 0 : index
    %c0_5 = arith.constant 0 : index
    %6 = vector.load %arg4[%c0_4, %c0_5] : memref<1x384xf32, #tpu.memory_space<vmem>>, vector<1x384xf32>
    %7 = vector.broadcast %6 : vector<1x384xf32> to vector<64x384xf32>
    %8 = arith.addf %5, %7 : vector<64x384xf32>
    %c0_6 = arith.constant 0 : index
    %c0_7 = arith.constant 0 : index
    %9 = vector.load %arg7[%c0_6, %c0_7] : memref<64x384xf32, #tpu.memory_space<vmem>>, vector<64x384xf32>
    tpu.vector_store %arg7[%c0_6, %c0_7], %8 {strides = array<i32>} : memref<64x384xf32, #tpu.memory_space<vmem>>, vector<64x384xf32>,
    %c0_8 = arith.constant 0 : index
    %c0_9 = arith.constant 0 : index
    %10 = vector.load %arg3[%c0_8, %c0_9] : memref<128x384xbf16, #tpu.memory_space<vmem>>, vector<128x384xbf16>
    %c0_10 = arith.constant 0 : index
    %c0_11 = arith.constant 0 : index
    %11 = vector.load %arg5[%c0_10, %c0_11] : memref<1x128xf32, #tpu.memory_space<vmem>>, vector<1x128xf32>
    %12 = vector.shape_cast %11 : vector<1x128xf32> to vector<1x128xf32>
    %13 = vector.broadcast %12 : vector<1x128xf32> to vector<8x128xf32>
    %c0_12 = arith.constant 0 : index
    %c0_13 = arith.constant 0 : index
    %14 = vector.load %arg8[%c0_12, %c0_13] : memref<8x128xf32, #tpu.memory_space<vmem>>, vector<8x128xf32>
    %c0_i32_14 = arith.constant 0 : i32
    %c8_i32 = arith.constant 8 : i32
    %15 = arith.muli %c0_i32_14, %c8_i32 : i32
    %16 = tpu.assume_multiple %15, 8 : i32
    %17 = arith.index_cast %16 : i32 to index
    %c0_15 = arith.constant 0 : index
    %18 = vector.load %arg7[%17, %c0_15] : memref<64x384xf32, #tpu.memory_space<vmem>>, vector<8x384xf32>
    %19 = arith.truncf %14 : vector<8x128xf32> to vector<8x128xbf16>
    %cst_16 = arith.constant dense<0.000000e+00> : vector<8x384xf32>
    %20 = tpu.matmul %19, %10, %cst_16 {dimension_numbers = #tpu.dot_dimension_numbers<[1], [0], [0], [1], [0, 0, 1, 1], [], []>} : vector<8x128xbf16>, vector<128x384xbf16>, vector<8x384xf32> -> vector<8x384xf32>
    %21 = vector.extract_strided_slice %18 {offsets = [0, 0], sizes = [8, 128], strides = [1, 1]} : vector<8x384xf32> to vector<8x128xf32>
    %22 = vector.extract_strided_slice %20 {offsets = [0, 0], sizes = [8, 128], strides = [1, 1]} : vector<8x384xf32> to vector<8x128xf32>
    %23 = arith.addf %21, %22 : vector<8x128xf32>
    %24 = arith.negf %23 : vector<8x128xf32>
    %25 = math.exp %24 : vector<8x128xf32>
    %cst_17 = arith.constant 1.000000e+00 : f32
    %26 = vector.broadcast %cst_17 : f32 to vector<8x128xf32>
    %27 = arith.addf %26, %25 : vector<8x128xf32>
    %28 = arith.divf %26, %27 : vector<8x128xf32>
    %29 = vector.extract_strided_slice %18 {offsets = [0, 128], sizes = [8, 128], strides = [1, 1]} : vector<8x384xf32> to vector<8x128xf32>
    %30 = vector.extract_strided_slice %20 {offsets = [0, 128], sizes = [8, 128], strides = [1, 1]} : vector<8x384xf32> to vector<8x128xf32>
    %31 = arith.addf %29, %30 : vector<8x128xf32>
    %32 = arith.negf %31 : vector<8x128xf32>
    %33 = math.exp %32 : vector<8x128xf32>
    %cst_18 = arith.constant 1.000000e+00 : f32
    %34 = vector.broadcast %cst_18 : f32 to vector<8x128xf32>
    %35 = arith.addf %34, %33 : vector<8x128xf32>
    %36 = arith.divf %34, %35 : vector<8x128xf32>
    %37 = vector.extract_strided_slice %18 {offsets = [0, 256], sizes = [8, 128], strides = [1, 1]} : vector<8x384xf32> to vector<8x128xf32>
    %38 = vector.extract_strided_slice %20 {offsets = [0, 256], sizes = [8, 128], strides = [1, 1]} : vector<8x384xf32> to vector<8x128xf32>
    %39 = arith.addf %38, %13 : vector<8x128xf32>
    %40 = arith.mulf %28, %39 : vector<8x128xf32>
    %41 = arith.addf %37, %40 : vector<8x128xf32>
    %42 = math.tanh %41 : vector<8x128xf32>
    %cst_19 = arith.constant 1.000000e+00 : f32
    %43 = vector.broadcast %cst_19 : f32 to vector<8x128xf32>
    %44 = arith.subf %43, %36 : vector<8x128xf32>
    %45 = arith.mulf %44, %42 : vector<8x128xf32>
    %46 = arith.mulf %36, %14 : vector<8x128xf32>
    %47 = arith.addf %45, %46 : vector<8x128xf32>
    %48 = arith.index_cast %16 : i32 to index
    %c0_20 = arith.constant 0 : index
    %49 = vector.load %arg6[%48, %c0_20] : memref<64x128xf32, #tpu.memory_space<vmem>>, vector<8x128xf32>
    tpu.vector_store %arg6[%48, %c0_20], %47 {strides = array<i32>} : memref<64x128xf32, #tpu.memory_space<vmem>>, vector<8x128xf32>,
    %c1_i32 = arith.constant 1 : i32
    %c8_i32_21 = arith.constant 8 : i32
    %50 = arith.muli %c1_i32, %c8_i32_21 : i32
    %51 = tpu.assume_multiple %50, 8 : i32
    %52 = arith.index_cast %51 : i32 to index
    %c0_22 = arith.constant 0 : index
    %53 = vector.load %arg7[%52, %c0_22] : memref<64x384xf32, #tpu.memory_space<vmem>>, vector<8x384xf32>
    %54 = arith.truncf %47 : vector<8x128xf32> to vector<8x128xbf16>
    %cst_23 = arith.constant dense<0.000000e+00> : vector<8x384xf32>
    %55 = tpu.matmul %54, %10, %cst_23 {dimension_numbers = #tpu.dot_dimension_numbers<[1], [0], [0], [1], [0, 0, 1, 1], [], []>} : vector<8x128xbf16>, vector<128x384xbf16>, vector<8x384xf32> -> vector<8x384xf32>
    %56 = vector.extract_strided_slice %53 {offsets = [0, 0], sizes = [8, 128], strides = [1, 1]} : vector<8x384xf32> to vector<8x128xf32>
    %57 = vector.extract_strided_slice %55 {offsets = [0, 0], sizes = [8, 128], strides = [1, 1]} : vector<8x384xf32> to vector<8x128xf32>
    %58 = arith.addf %56, %57 : vector<8x128xf32>
    %59 = arith.negf %58 : vector<8x128xf32>
    %60 = math.exp %59 : vector<8x128xf32>
    %cst_24 = arith.constant 1.000000e+00 : f32
    %61 = vector.broadcast %cst_24 : f32 to vector<8x128xf32>
    %62 = arith.addf %61, %60 : vector<8x128xf32>
    %63 = arith.divf %61, %62 : vector<8x128xf32>
    %64 = vector.extract_strided_slice %53 {offsets = [0, 128], sizes = [8, 128], strides = [1, 1]} : vector<8x384xf32> to vector<8x128xf32>
    %65 = vector.extract_strided_slice %55 {offsets = [0, 128], sizes = [8, 128], strides = [1, 1]} : vector<8x384xf32> to vector<8x128xf32>
    %66 = arith.addf %64, %65 : vector<8x128xf32>
    %67 = arith.negf %66 : vector<8x128xf32>
    %68 = math.exp %67 : vector<8x128xf32>
    %cst_25 = arith.constant 1.000000e+00 : f32
    %69 = vector.broadcast %cst_25 : f32 to vector<8x128xf32>
    %70 = arith.addf %69, %68 : vector<8x128xf32>
    %71 = arith.divf %69, %70 : vector<8x128xf32>
    %72 = vector.extract_strided_slice %53 {offsets = [0, 256], sizes = [8, 128], strides = [1, 1]} : vector<8x384xf32> to vector<8x128xf32>
    %73 = vector.extract_strided_slice %55 {offsets = [0, 256], sizes = [8, 128], strides = [1, 1]} : vector<8x384xf32> to vector<8x128xf32>
    %74 = arith.addf %73, %13 : vector<8x128xf32>
    %75 = arith.mulf %63, %74 : vector<8x128xf32>
    %76 = arith.addf %72, %75 : vector<8x128xf32>
    %77 = math.tanh %76 : vector<8x128xf32>
    %cst_26 = arith.constant 1.000000e+00 : f32
    %78 = vector.broadcast %cst_26 : f32 to vector<8x128xf32>
    %79 = arith.subf %78, %71 : vector<8x128xf32>
    %80 = arith.mulf %79, %77 : vector<8x128xf32>
    %81 = arith.mulf %71, %47 : vector<8x128xf32>
    %82 = arith.addf %80, %81 : vector<8x128xf32>
    %83 = arith.index_cast %51 : i32 to index
    %c0_27 = arith.constant 0 : index
    %84 = vector.load %arg6[%83, %c0_27] : memref<64x128xf32, #tpu.memory_space<vmem>>, vector<8x128xf32>
    tpu.vector_store %arg6[%83, %c0_27], %82 {strides = array<i32>} : memref<64x128xf32, #tpu.memory_space<vmem>>, vector<8x128xf32>,
    %c2_i32 = arith.constant 2 : i32
    %c8_i32_28 = arith.constant 8 : i32
    %85 = arith.muli %c2_i32, %c8_i32_28 : i32
    %86 = tpu.assume_multiple %85, 8 : i32
    %87 = arith.index_cast %86 : i32 to index
    %c0_29 = arith.constant 0 : index
    %88 = vector.load %arg7[%87, %c0_29] : memref<64x384xf32, #tpu.memory_space<vmem>>, vector<8x384xf32>
    %89 = arith.truncf %82 : vector<8x128xf32> to vector<8x128xbf16>
    %cst_30 = arith.constant dense<0.000000e+00> : vector<8x384xf32>
    %90 = tpu.matmul %89, %10, %cst_30 {dimension_numbers = #tpu.dot_dimension_numbers<[1], [0], [0], [1], [0, 0, 1, 1], [], []>} : vector<8x128xbf16>, vector<128x384xbf16>, vector<8x384xf32> -> vector<8x384xf32>
    %91 = vector.extract_strided_slice %88 {offsets = [0, 0], sizes = [8, 128], strides = [1, 1]} : vector<8x384xf32> to vector<8x128xf32>
    %92 = vector.extract_strided_slice %90 {offsets = [0, 0], sizes = [8, 128], strides = [1, 1]} : vector<8x384xf32> to vector<8x128xf32>
    %93 = arith.addf %91, %92 : vector<8x128xf32>
    %94 = arith.negf %93 : vector<8x128xf32>
    %95 = math.exp %94 : vector<8x128xf32>
    %cst_31 = arith.constant 1.000000e+00 : f32
    %96 = vector.broadcast %cst_31 : f32 to vector<8x128xf32>
    %97 = arith.addf %96, %95 : vector<8x128xf32>
    %98 = arith.divf %96, %97 : vector<8x128xf32>
    %99 = vector.extract_strided_slice %88 {offsets = [0, 128], sizes = [8, 128], strides = [1, 1]} : vector<8x384xf32> to vector<8x128xf32>
    %100 = vector.extract_strided_slice %90 {offsets = [0, 128], sizes = [8, 128], strides = [1, 1]} : vector<8x384xf32> to vector<8x128xf32>
    %101 = arith.addf %99, %100 : vector<8x128xf32>
    %102 = arith.negf %101 : vector<8x128xf32>
    %103 = math.exp %102 : vector<8x128xf32>
    %cst_32 = arith.constant 1.000000e+00 : f32
    %104 = vector.broadcast %cst_32 : f32 to vector<8x128xf32>
    %105 = arith.addf %104, %103 : vector<8x128xf32>
    %106 = arith.divf %104, %105 : vector<8x128xf32>
    %107 = vector.extract_strided_slice %88 {offsets = [0, 256], sizes = [8, 128], strides = [1, 1]} : vector<8x384xf32> to vector<8x128xf32>
    %108 = vector.extract_strided_slice %90 {offsets = [0, 256], sizes = [8, 128], strides = [1, 1]} : vector<8x384xf32> to vector<8x128xf32>
    %109 = arith.addf %108, %13 : vector<8x128xf32>
    %110 = arith.mulf %98, %109 : vector<8x128xf32>
    %111 = arith.addf %107, %110 : vector<8x128xf32>
    %112 = math.tanh %111 : vector<8x128xf32>
    %cst_33 = arith.constant 1.000000e+00 : f32
    %113 = vector.broadcast %cst_33 : f32 to vector<8x128xf32>
    %114 = arith.subf %113, %106 : vector<8x128xf32>
    %115 = arith.mulf %114, %112 : vector<8x128xf32>
    %116 = arith.mulf %106, %82 : vector<8x128xf32>
    %117 = arith.addf %115, %116 : vector<8x128xf32>
    %118 = arith.index_cast %86 : i32 to index
    %c0_34 = arith.constant 0 : index
    %119 = vector.load %arg6[%118, %c0_34] : memref<64x128xf32, #tpu.memory_space<vmem>>, vector<8x128xf32>
    tpu.vector_store %arg6[%118, %c0_34], %117 {strides = array<i32>} : memref<64x128xf32, #tpu.memory_space<vmem>>, vector<8x128xf32>,
    %c3_i32 = arith.constant 3 : i32
    %c8_i32_35 = arith.constant 8 : i32
    %120 = arith.muli %c3_i32, %c8_i32_35 : i32
    %121 = tpu.assume_multiple %120, 8 : i32
    %122 = arith.index_cast %121 : i32 to index
    %c0_36 = arith.constant 0 : index
    %123 = vector.load %arg7[%122, %c0_36] : memref<64x384xf32, #tpu.memory_space<vmem>>, vector<8x384xf32>
    %124 = arith.truncf %117 : vector<8x128xf32> to vector<8x128xbf16>
    %cst_37 = arith.constant dense<0.000000e+00> : vector<8x384xf32>
    %125 = tpu.matmul %124, %10, %cst_37 {dimension_numbers = #tpu.dot_dimension_numbers<[1], [0], [0], [1], [0, 0, 1, 1], [], []>} : vector<8x128xbf16>, vector<128x384xbf16>, vector<8x384xf32> -> vector<8x384xf32>
    %126 = vector.extract_strided_slice %123 {offsets = [0, 0], sizes = [8, 128], strides = [1, 1]} : vector<8x384xf32> to vector<8x128xf32>
    %127 = vector.extract_strided_slice %125 {offsets = [0, 0], sizes = [8, 128], strides = [1, 1]} : vector<8x384xf32> to vector<8x128xf32>
    %128 = arith.addf %126, %127 : vector<8x128xf32>
    %129 = arith.negf %128 : vector<8x128xf32>
    %130 = math.exp %129 : vector<8x128xf32>
    %cst_38 = arith.constant 1.000000e+00 : f32
    %131 = vector.broadcast %cst_38 : f32 to vector<8x128xf32>
    %132 = arith.addf %131, %130 : vector<8x128xf32>
    %133 = arith.divf %131, %132 : vector<8x128xf32>
    %134 = vector.extract_strided_slice %123 {offsets = [0, 128], sizes = [8, 128], strides = [1, 1]} : vector<8x384xf32> to vector<8x128xf32>
    %135 = vector.extract_strided_slice %125 {offsets = [0, 128], sizes = [8, 128], strides = [1, 1]} : vector<8x384xf32> to vector<8x128xf32>
    %136 = arith.addf %134, %135 : vector<8x128xf32>
    %137 = arith.negf %136 : vector<8x128xf32>
    %138 = math.exp %137 : vector<8x128xf32>
    %cst_39 = arith.constant 1.000000e+00 : f32
    %139 = vector.broadcast %cst_39 : f32 to vector<8x128xf32>
    %140 = arith.addf %139, %138 : vector<8x128xf32>
    %141 = arith.divf %139, %140 : vector<8x128xf32>
    %142 = vector.extract_strided_slice %123 {offsets = [0, 256], sizes = [8, 128], strides = [1, 1]} : vector<8x384xf32> to vector<8x128xf32>
    %143 = vector.extract_strided_slice %125 {offsets = [0, 256], sizes = [8, 128], strides = [1, 1]} : vector<8x384xf32> to vector<8x128xf32>
    %144 = arith.addf %143, %13 : vector<8x128xf32>
    %145 = arith.mulf %133, %144 : vector<8x128xf32>
    %146 = arith.addf %142, %145 : vector<8x128xf32>
    %147 = math.tanh %146 : vector<8x128xf32>
    %cst_40 = arith.constant 1.000000e+00 : f32
    %148 = vector.broadcast %cst_40 : f32 to vector<8x128xf32>
    %149 = arith.subf %148, %141 : vector<8x128xf32>
    %150 = arith.mulf %149, %147 : vector<8x128xf32>
    %151 = arith.mulf %141, %117 : vector<8x128xf32>
    %152 = arith.addf %150, %151 : vector<8x128xf32>
    %153 = arith.index_cast %121 : i32 to index
    %c0_41 = arith.constant 0 : index
    %154 = vector.load %arg6[%153, %c0_41] : memref<64x128xf32, #tpu.memory_space<vmem>>, vector<8x128xf32>
    tpu.vector_store %arg6[%153, %c0_41], %152 {strides = array<i32>} : memref<64x128xf32, #tpu.memory_space<vmem>>, vector<8x128xf32>,
    %c4_i32 = arith.constant 4 : i32
    %c8_i32_42 = arith.constant 8 : i32
    %155 = arith.muli %c4_i32, %c8_i32_42 : i32
    %156 = tpu.assume_multiple %155, 8 : i32
    %157 = arith.index_cast %156 : i32 to index
    %c0_43 = arith.constant 0 : index
    %158 = vector.load %arg7[%157, %c0_43] : memref<64x384xf32, #tpu.memory_space<vmem>>, vector<8x384xf32>
    %159 = arith.truncf %152 : vector<8x128xf32> to vector<8x128xbf16>
    %cst_44 = arith.constant dense<0.000000e+00> : vector<8x384xf32>
    %160 = tpu.matmul %159, %10, %cst_44 {dimension_numbers = #tpu.dot_dimension_numbers<[1], [0], [0], [1], [0, 0, 1, 1], [], []>} : vector<8x128xbf16>, vector<128x384xbf16>, vector<8x384xf32> -> vector<8x384xf32>
    %161 = vector.extract_strided_slice %158 {offsets = [0, 0], sizes = [8, 128], strides = [1, 1]} : vector<8x384xf32> to vector<8x128xf32>
    %162 = vector.extract_strided_slice %160 {offsets = [0, 0], sizes = [8, 128], strides = [1, 1]} : vector<8x384xf32> to vector<8x128xf32>
    %163 = arith.addf %161, %162 : vector<8x128xf32>
    %164 = arith.negf %163 : vector<8x128xf32>
    %165 = math.exp %164 : vector<8x128xf32>
    %cst_45 = arith.constant 1.000000e+00 : f32
    %166 = vector.broadcast %cst_45 : f32 to vector<8x128xf32>
    %167 = arith.addf %166, %165 : vector<8x128xf32>
    %168 = arith.divf %166, %167 : vector<8x128xf32>
    %169 = vector.extract_strided_slice %158 {offsets = [0, 128], sizes = [8, 128], strides = [1, 1]} : vector<8x384xf32> to vector<8x128xf32>
    %170 = vector.extract_strided_slice %160 {offsets = [0, 128], sizes = [8, 128], strides = [1, 1]} : vector<8x384xf32> to vector<8x128xf32>
    %171 = arith.addf %169, %170 : vector<8x128xf32>
    %172 = arith.negf %171 : vector<8x128xf32>
    %173 = math.exp %172 : vector<8x128xf32>
    %cst_46 = arith.constant 1.000000e+00 : f32
    %174 = vector.broadcast %cst_46 : f32 to vector<8x128xf32>
    %175 = arith.addf %174, %173 : vector<8x128xf32>
    %176 = arith.divf %174, %175 : vector<8x128xf32>
    %177 = vector.extract_strided_slice %158 {offsets = [0, 256], sizes = [8, 128], strides = [1, 1]} : vector<8x384xf32> to vector<8x128xf32>
    %178 = vector.extract_strided_slice %160 {offsets = [0, 256], sizes = [8, 128], strides = [1, 1]} : vector<8x384xf32> to vector<8x128xf32>
    %179 = arith.addf %178, %13 : vector<8x128xf32>
    %180 = arith.mulf %168, %179 : vector<8x128xf32>
    %181 = arith.addf %177, %180 : vector<8x128xf32>
    %182 = math.tanh %181 : vector<8x128xf32>
    %cst_47 = arith.constant 1.000000e+00 : f32
    %183 = vector.broadcast %cst_47 : f32 to vector<8x128xf32>
    %184 = arith.subf %183, %176 : vector<8x128xf32>
    %185 = arith.mulf %184, %182 : vector<8x128xf32>
    %186 = arith.mulf %176, %152 : vector<8x128xf32>
    %187 = arith.addf %185, %186 : vector<8x128xf32>
    %188 = arith.index_cast %156 : i32 to index
    %c0_48 = arith.constant 0 : index
    %189 = vector.load %arg6[%188, %c0_48] : memref<64x128xf32, #tpu.memory_space<vmem>>, vector<8x128xf32>
    tpu.vector_store %arg6[%188, %c0_48], %187 {strides = array<i32>} : memref<64x128xf32, #tpu.memory_space<vmem>>, vector<8x128xf32>,
    %c5_i32 = arith.constant 5 : i32
    %c8_i32_49 = arith.constant 8 : i32
    %190 = arith.muli %c5_i32, %c8_i32_49 : i32
    %191 = tpu.assume_multiple %190, 8 : i32
    %192 = arith.index_cast %191 : i32 to index
    %c0_50 = arith.constant 0 : index
    %193 = vector.load %arg7[%192, %c0_50] : memref<64x384xf32, #tpu.memory_space<vmem>>, vector<8x384xf32>
    %194 = arith.truncf %187 : vector<8x128xf32> to vector<8x128xbf16>
    %cst_51 = arith.constant dense<0.000000e+00> : vector<8x384xf32>
    %195 = tpu.matmul %194, %10, %cst_51 {dimension_numbers = #tpu.dot_dimension_numbers<[1], [0], [0], [1], [0, 0, 1, 1], [], []>} : vector<8x128xbf16>, vector<128x384xbf16>, vector<8x384xf32> -> vector<8x384xf32>
    %196 = vector.extract_strided_slice %193 {offsets = [0, 0], sizes = [8, 128], strides = [1, 1]} : vector<8x384xf32> to vector<8x128xf32>
    %197 = vector.extract_strided_slice %195 {offsets = [0, 0], sizes = [8, 128], strides = [1, 1]} : vector<8x384xf32> to vector<8x128xf32>
    %198 = arith.addf %196, %197 : vector<8x128xf32>
    %199 = arith.negf %198 : vector<8x128xf32>
    %200 = math.exp %199 : vector<8x128xf32>
    %cst_52 = arith.constant 1.000000e+00 : f32
    %201 = vector.broadcast %cst_52 : f32 to vector<8x128xf32>
    %202 = arith.addf %201, %200 : vector<8x128xf32>
    %203 = arith.divf %201, %202 : vector<8x128xf32>
    %204 = vector.extract_strided_slice %193 {offsets = [0, 128], sizes = [8, 128], strides = [1, 1]} : vector<8x384xf32> to vector<8x128xf32>
    %205 = vector.extract_strided_slice %195 {offsets = [0, 128], sizes = [8, 128], strides = [1, 1]} : vector<8x384xf32> to vector<8x128xf32>
    %206 = arith.addf %204, %205 : vector<8x128xf32>
    %207 = arith.negf %206 : vector<8x128xf32>
    %208 = math.exp %207 : vector<8x128xf32>
    %cst_53 = arith.constant 1.000000e+00 : f32
    %209 = vector.broadcast %cst_53 : f32 to vector<8x128xf32>
    %210 = arith.addf %209, %208 : vector<8x128xf32>
    %211 = arith.divf %209, %210 : vector<8x128xf32>
    %212 = vector.extract_strided_slice %193 {offsets = [0, 256], sizes = [8, 128], strides = [1, 1]} : vector<8x384xf32> to vector<8x128xf32>
    %213 = vector.extract_strided_slice %195 {offsets = [0, 256], sizes = [8, 128], strides = [1, 1]} : vector<8x384xf32> to vector<8x128xf32>
    %214 = arith.addf %213, %13 : vector<8x128xf32>
    %215 = arith.mulf %203, %214 : vector<8x128xf32>
    %216 = arith.addf %212, %215 : vector<8x128xf32>
    %217 = math.tanh %216 : vector<8x128xf32>
    %cst_54 = arith.constant 1.000000e+00 : f32
    %218 = vector.broadcast %cst_54 : f32 to vector<8x128xf32>
    %219 = arith.subf %218, %211 : vector<8x128xf32>
    %220 = arith.mulf %219, %217 : vector<8x128xf32>
    %221 = arith.mulf %211, %187 : vector<8x128xf32>
    %222 = arith.addf %220, %221 : vector<8x128xf32>
    %223 = arith.index_cast %191 : i32 to index
    %c0_55 = arith.constant 0 : index
    %224 = vector.load %arg6[%223, %c0_55] : memref<64x128xf32, #tpu.memory_space<vmem>>, vector<8x128xf32>
    tpu.vector_store %arg6[%223, %c0_55], %222 {strides = array<i32>} : memref<64x128xf32, #tpu.memory_space<vmem>>, vector<8x128xf32>,
    %c6_i32 = arith.constant 6 : i32
    %c8_i32_56 = arith.constant 8 : i32
    %225 = arith.muli %c6_i32, %c8_i32_56 : i32
    %226 = tpu.assume_multiple %225, 8 : i32
    %227 = arith.index_cast %226 : i32 to index
    %c0_57 = arith.constant 0 : index
    %228 = vector.load %arg7[%227, %c0_57] : memref<64x384xf32, #tpu.memory_space<vmem>>, vector<8x384xf32>
    %229 = arith.truncf %222 : vector<8x128xf32> to vector<8x128xbf16>
    %cst_58 = arith.constant dense<0.000000e+00> : vector<8x384xf32>
    %230 = tpu.matmul %229, %10, %cst_58 {dimension_numbers = #tpu.dot_dimension_numbers<[1], [0], [0], [1], [0, 0, 1, 1], [], []>} : vector<8x128xbf16>, vector<128x384xbf16>, vector<8x384xf32> -> vector<8x384xf32>
    %231 = vector.extract_strided_slice %228 {offsets = [0, 0], sizes = [8, 128], strides = [1, 1]} : vector<8x384xf32> to vector<8x128xf32>
    %232 = vector.extract_strided_slice %230 {offsets = [0, 0], sizes = [8, 128], strides = [1, 1]} : vector<8x384xf32> to vector<8x128xf32>
    %233 = arith.addf %231, %232 : vector<8x128xf32>
    %234 = arith.negf %233 : vector<8x128xf32>
    %235 = math.exp %234 : vector<8x128xf32>
    %cst_59 = arith.constant 1.000000e+00 : f32
    %236 = vector.broadcast %cst_59 : f32 to vector<8x128xf32>
    %237 = arith.addf %236, %235 : vector<8x128xf32>
    %238 = arith.divf %236, %237 : vector<8x128xf32>
    %239 = vector.extract_strided_slice %228 {offsets = [0, 128], sizes = [8, 128], strides = [1, 1]} : vector<8x384xf32> to vector<8x128xf32>
    %240 = vector.extract_strided_slice %230 {offsets = [0, 128], sizes = [8, 128], strides = [1, 1]} : vector<8x384xf32> to vector<8x128xf32>
    %241 = arith.addf %239, %240 : vector<8x128xf32>
    %242 = arith.negf %241 : vector<8x128xf32>
    %243 = math.exp %242 : vector<8x128xf32>
    %cst_60 = arith.constant 1.000000e+00 : f32
    %244 = vector.broadcast %cst_60 : f32 to vector<8x128xf32>
    %245 = arith.addf %244, %243 : vector<8x128xf32>
    %246 = arith.divf %244, %245 : vector<8x128xf32>
    %247 = vector.extract_strided_slice %228 {offsets = [0, 256], sizes = [8, 128], strides = [1, 1]} : vector<8x384xf32> to vector<8x128xf32>
    %248 = vector.extract_strided_slice %230 {offsets = [0, 256], sizes = [8, 128], strides = [1, 1]} : vector<8x384xf32> to vector<8x128xf32>
    %249 = arith.addf %248, %13 : vector<8x128xf32>
    %250 = arith.mulf %238, %249 : vector<8x128xf32>
    %251 = arith.addf %247, %250 : vector<8x128xf32>
    %252 = math.tanh %251 : vector<8x128xf32>
    %cst_61 = arith.constant 1.000000e+00 : f32
    %253 = vector.broadcast %cst_61 : f32 to vector<8x128xf32>
    %254 = arith.subf %253, %246 : vector<8x128xf32>
    %255 = arith.mulf %254, %252 : vector<8x128xf32>
    %256 = arith.mulf %246, %222 : vector<8x128xf32>
    %257 = arith.addf %255, %256 : vector<8x128xf32>
    %258 = arith.index_cast %226 : i32 to index
    %c0_62 = arith.constant 0 : index
    %259 = vector.load %arg6[%258, %c0_62] : memref<64x128xf32, #tpu.memory_space<vmem>>, vector<8x128xf32>
    tpu.vector_store %arg6[%258, %c0_62], %257 {strides = array<i32>} : memref<64x128xf32, #tpu.memory_space<vmem>>, vector<8x128xf32>,
    %c7_i32 = arith.constant 7 : i32
    %c8_i32_63 = arith.constant 8 : i32
    %260 = arith.muli %c7_i32, %c8_i32_63 : i32
    %261 = tpu.assume_multiple %260, 8 : i32
    %262 = arith.index_cast %261 : i32 to index
    %c0_64 = arith.constant 0 : index
    %263 = vector.load %arg7[%262, %c0_64] : memref<64x384xf32, #tpu.memory_space<vmem>>, vector<8x384xf32>
    %264 = arith.truncf %257 : vector<8x128xf32> to vector<8x128xbf16>
    %cst_65 = arith.constant dense<0.000000e+00> : vector<8x384xf32>
    %265 = tpu.matmul %264, %10, %cst_65 {dimension_numbers = #tpu.dot_dimension_numbers<[1], [0], [0], [1], [0, 0, 1, 1], [], []>} : vector<8x128xbf16>, vector<128x384xbf16>, vector<8x384xf32> -> vector<8x384xf32>
    %266 = vector.extract_strided_slice %263 {offsets = [0, 0], sizes = [8, 128], strides = [1, 1]} : vector<8x384xf32> to vector<8x128xf32>
    %267 = vector.extract_strided_slice %265 {offsets = [0, 0], sizes = [8, 128], strides = [1, 1]} : vector<8x384xf32> to vector<8x128xf32>
    %268 = arith.addf %266, %267 : vector<8x128xf32>
    %269 = arith.negf %268 : vector<8x128xf32>
    %270 = math.exp %269 : vector<8x128xf32>
    %cst_66 = arith.constant 1.000000e+00 : f32
    %271 = vector.broadcast %cst_66 : f32 to vector<8x128xf32>
    %272 = arith.addf %271, %270 : vector<8x128xf32>
    %273 = arith.divf %271, %272 : vector<8x128xf32>
    %274 = vector.extract_strided_slice %263 {offsets = [0, 128], sizes = [8, 128], strides = [1, 1]} : vector<8x384xf32> to vector<8x128xf32>
    %275 = vector.extract_strided_slice %265 {offsets = [0, 128], sizes = [8, 128], strides = [1, 1]} : vector<8x384xf32> to vector<8x128xf32>
    %276 = arith.addf %274, %275 : vector<8x128xf32>
    %277 = arith.negf %276 : vector<8x128xf32>
    %278 = math.exp %277 : vector<8x128xf32>
    %cst_67 = arith.constant 1.000000e+00 : f32
    %279 = vector.broadcast %cst_67 : f32 to vector<8x128xf32>
    %280 = arith.addf %279, %278 : vector<8x128xf32>
    %281 = arith.divf %279, %280 : vector<8x128xf32>
    %282 = vector.extract_strided_slice %263 {offsets = [0, 256], sizes = [8, 128], strides = [1, 1]} : vector<8x384xf32> to vector<8x128xf32>
    %283 = vector.extract_strided_slice %265 {offsets = [0, 256], sizes = [8, 128], strides = [1, 1]} : vector<8x384xf32> to vector<8x128xf32>
    %284 = arith.addf %283, %13 : vector<8x128xf32>
    %285 = arith.mulf %273, %284 : vector<8x128xf32>
    %286 = arith.addf %282, %285 : vector<8x128xf32>
    %287 = math.tanh %286 : vector<8x128xf32>
    %cst_68 = arith.constant 1.000000e+00 : f32
    %288 = vector.broadcast %cst_68 : f32 to vector<8x128xf32>
    %289 = arith.subf %288, %281 : vector<8x128xf32>
    %290 = arith.mulf %289, %287 : vector<8x128xf32>
    %291 = arith.mulf %281, %257 : vector<8x128xf32>
    %292 = arith.addf %290, %291 : vector<8x128xf32>
    %293 = arith.index_cast %261 : i32 to index
    %c0_69 = arith.constant 0 : index
    %294 = vector.load %arg6[%293, %c0_69] : memref<64x128xf32, #tpu.memory_space<vmem>>, vector<8x128xf32>
    tpu.vector_store %arg6[%293, %c0_69], %292 {strides = array<i32>} : memref<64x128xf32, #tpu.memory_space<vmem>>, vector<8x128xf32>,
    %c8_i32_70 = arith.constant 8 : i32
    %c0_71 = arith.constant 0 : index
    %c0_72 = arith.constant 0 : index
    %295 = vector.load %arg8[%c0_71, %c0_72] : memref<8x128xf32, #tpu.memory_space<vmem>>, vector<8x128xf32>
    tpu.vector_store %arg8[%c0_71, %c0_72], %292 {strides = array<i32>} : memref<8x128xf32, #tpu.memory_space<vmem>>, vector<8x128xf32>,
    return
  }
  func.func @transform_0(%arg0: i32) -> (i32, i32) {
    %c0_i32 = arith.constant 0 : i32
    %c0_i32_0 = arith.constant 0 : i32
    return %arg0, %c0_i32 : i32, i32
  }
  func.func @transform_1(%arg0: i32) -> (i32, i32) {
    %c0_i32 = arith.constant 0 : i32
    %c0_i32_0 = arith.constant 0 : i32
    %c0_i32_1 = arith.constant 0 : i32
    return %c0_i32, %c0_i32_0 : i32, i32
  }
  func.func @transform_2(%arg0: i32) -> (i32, i32) {
    %c0_i32 = arith.constant 0 : i32
    %c0_i32_0 = arith.constant 0 : i32
    %c0_i32_1 = arith.constant 0 : i32
    return %c0_i32, %c0_i32_0 : i32, i32
  }
  func.func @transform_3(%arg0: i32) -> (i32, i32) {
    %c0_i32 = arith.constant 0 : i32
    %c0_i32_0 = arith.constant 0 : i32
    %c0_i32_1 = arith.constant 0 : i32
    return %c0_i32, %c0_i32_0 : i32, i32
  }
  func.func @transform_4(%arg0: i32) -> (i32, i32) {
    %c0_i32 = arith.constant 0 : i32
    %c0_i32_0 = arith.constant 0 : i32
    %c0_i32_1 = arith.constant 0 : i32
    return %c0_i32, %c0_i32_0 : i32, i32
  }
  func.func @transform_5(%arg0: i32) -> (i32, i32) {
    %c0_i32 = arith.constant 0 : i32
    %c0_i32_0 = arith.constant 0 : i32
    return %arg0, %c0_i32 : i32, i32
  }
}

</mosaic_0001>

<llo_original>
// kernel: encoder_rnn_forward.1
$region0: #{encoder_rnn_forward.1}
  #allocation0 [shape = 'u32[]', space=smem, size = 0x4, offset = 0x4, fixed_abs, tag = 'smem constant byte address 0x4 - core index']
  #allocation1 [shape = 'u32[72,128]{1,0:T(1,128)}', space=vmem, size = 0x9000, scoped, tag = 'internal scratch']
  #allocation2 [shape = 'f32[64,384]{1,0:T(8,128)}', space=vmem, size = 0x18000, scoped, tag = 'scratch operand']
  #allocation3 [shape = 'f32[8,128]{1,0:T(8,128)}', space=vmem, size = 0x1000, scoped, tag = 'scratch operand']
  %s0 = inlined_call_operand.vmem [shape: bf16[64,128], index: 0, kind: input, shape index: {}]
  %s1 = inlined_call_operand.vmem [shape: bf16[128,384], index: 1, kind: input, shape index: {}]
  %s2 = inlined_call_operand.vmem [shape: bf16[128,384], index: 2, kind: input, shape index: {}]
  %s3 = inlined_call_operand.vmem [shape: f32[1,384], index: 3, kind: input, shape index: {}]
  %s4 = inlined_call_operand.vmem [shape: f32[1,128], index: 4, kind: input, shape index: {}]
  %s5 = inlined_call_operand.vmem [shape: f32[64,128], index: 5, kind: output, shape index: {}]
  %s6 = sld [smem:[#allocation0]]
  $region34: #{encoder_rnn_forward.1} parent=0
    _
  %s8 = ssub.s32 1, %s6
  %s9 = scalar_select 0, %s8, %s6
  // Predicated region
  $region2: #{encoder_rnn_forward.1} parent=0 // pred_check
    _
  $region3: #{encoder_rnn_forward.1} parent=0 // pred_check_branch
    %11 = sbr.rel (0) target = $region5
  $region4: #{encoder_rnn_forward.1} parent=0 // pred_region
    _
  $region5: #{encoder_rnn_forward.1} parent=0 // pred_fallthru
    _
  // Predicated region
  $region6: #{encoder_rnn_forward.1} parent=0 // pred_check
    _
  $region7: #{encoder_rnn_forward.1} parent=0 // pred_check_branch
    %13 = sbr.rel (0) target = $region9
  $region8: #{encoder_rnn_forward.1} parent=0 // pred_region
    _
  $region9: #{encoder_rnn_forward.1} parent=0 // pred_fallthru
    _
  // Predicated region
  $region10: #{encoder_rnn_forward.1} parent=0 // pred_check
    _
  $region11: #{encoder_rnn_forward.1} parent=0 // pred_check_branch
    %15 = sbr.rel (0) target = $region13
  $region12: #{encoder_rnn_forward.1} parent=0 // pred_region
    _
  $region13: #{encoder_rnn_forward.1} parent=0 // pred_fallthru
    _
  // Predicated region
  $region14: #{encoder_rnn_forward.1} parent=0 // pred_check
    _
  $region15: #{encoder_rnn_forward.1} parent=0 // pred_check_branch
    %17 = sbr.rel (0) target = $region17
  $region16: #{encoder_rnn_forward.1} parent=0 // pred_region
    _
  $region17: #{encoder_rnn_forward.1} parent=0 // pred_fallthru
    _
  // Predicated region
  $region18: #{encoder_rnn_forward.1} parent=0 // pred_check
    _
  $region19: #{encoder_rnn_forward.1} parent=0 // pred_check_branch
    %19 = sbr.rel (0) target = $region21
  $region20: #{encoder_rnn_forward.1} parent=0 // pred_region
    _
  $region21: #{encoder_rnn_forward.1} parent=0 // pred_fallthru
    _
  %p20 = scmp.eq.s32.totalorder 0, 0
  // Predicated region
  $region22: #{encoder_rnn_forward.1} parent=0 // pred_check
    %p21 = pneg %p20
  $region23: #{encoder_rnn_forward.1} parent=0 // pred_check_branch
    %23 = sbr.rel (%p21) target = $region25
  $region24: #{encoder_rnn_forward.1} parent=0 // pred_region
    %24 = vst [vmem:[#allocation3] sm:$0xff] 0.0
  $region25: #{encoder_rnn_forward.1} parent=0 // pred_fallthru
    _
  %v25 = vld [vmem:[%s0] sm:$0xf]
  %v26 = vld [vmem:[%s0 + $0x4] sm:$0xf]
  %v27 = vld [vmem:[%s0 + $0x8] sm:$0xf]
  %v28 = vld [vmem:[%s0 + $0xc] sm:$0xf]
  %v29 = vld [vmem:[%s0 + $0x10] sm:$0xf]
  %v30 = vld [vmem:[%s0 + $0x14] sm:$0xf]
  %v31 = vld [vmem:[%s0 + $0x18] sm:$0xf]
  %v32 = vld [vmem:[%s0 + $0x1c] sm:$0xf]
  %v33 = vld [vmem:[%s1] sm:$0xff]
  %v34 = vld [vmem:[%s1 + $0x8] sm:$0xf]
  %v35 = vld [vmem:[%s1 + $0xc] sm:$0xff]
  %v36 = vld [vmem:[%s1 + $0x14] sm:$0xf]
  %v37 = vld [vmem:[%s1 + $0x18] sm:$0xff]
  %v38 = vld [vmem:[%s1 + $0x20] sm:$0xf]
  %v39 = vld [vmem:[%s1 + $0x24] sm:$0xff]
  %v40 = vld [vmem:[%s1 + $0x2c] sm:$0xf]
  %v41 = vld [vmem:[%s1 + $0x30] sm:$0xff]
  %v42 = vld [vmem:[%s1 + $0x38] sm:$0xf]
  %v43 = vld [vmem:[%s1 + $0x3c] sm:$0xff]
  %v44 = vld [vmem:[%s1 + $0x44] sm:$0xf]
  %v45 = vld [vmem:[%s1 + $0x48] sm:$0xff]
  %v46 = vld [vmem:[%s1 + $0x50] sm:$0xf]
  %v47 = vld [vmem:[%s1 + $0x54] sm:$0xff]
  %v48 = vld [vmem:[%s1 + $0x5c] sm:$0xf]
  %v49 = vld [vmem:[%s1 + $0x60] sm:$0xff]
  %v50 = vld [vmem:[%s1 + $0x68] sm:$0xf]
  %v51 = vld [vmem:[%s1 + $0x6c] sm:$0xff]
  %v52 = vld [vmem:[%s1 + $0x74] sm:$0xf]
  %v53 = vld [vmem:[%s1 + $0x78] sm:$0xff]
  %v54 = vld [vmem:[%s1 + $0x80] sm:$0xf]
  %v55 = vld [vmem:[%s1 + $0x84] sm:$0xff]
  %v56 = vld [vmem:[%s1 + $0x8c] sm:$0xf]
  %v57 = vld [vmem:[%s1 + $0x90] sm:$0xff]
  %v58 = vld [vmem:[%s1 + $0x98] sm:$0xf]
  %v59 = vld [vmem:[%s1 + $0x9c] sm:$0xff]
  %v60 = vld [vmem:[%s1 + $0xa4] sm:$0xf]
  %v61 = vld [vmem:[%s1 + $0xa8] sm:$0xff]
  %v62 = vld [vmem:[%s1 + $0xb0] sm:$0xf]
  %v63 = vld [vmem:[%s1 + $0xb4] sm:$0xff]
  %v64 = vld [vmem:[%s1 + $0xbc] sm:$0xf]
  %v65 = vld [vmem:[%s3] sm:$0x7]
  %v67 = vperm.slane %v65, 0
  %v68 = vperm.slane %v65, 1
  %v69 = vperm.slane %v65, 2
  %v81 = vunpack.c.l.b16 %v25
  %v82 = vunpack.c.l.b16 %v26
  %v83 = vunpack.c.l.b16 %v27
  %v84 = vunpack.c.l.b16 %v28
  %v85 = vunpack.c.l.b16 %v29
  %v86 = vunpack.c.l.b16 %v30
  %v87 = vunpack.c.l.b16 %v31
  %v88 = vunpack.c.l.b16 %v32
  %v89 = vpack.c.b16 %v82, %v81
  %v90 = vpack.c.b16 %v84, %v83
  %v91 = vpack.c.b16 %v86, %v85
  %v92 = vpack.c.b16 %v88, %v87
  %v129 = vunpack.c.l.b16 %v33
  %v130 = vunpack.c.h.b16 %v33
  %v131 = vunpack.c.l.b16 %v34
  %v132 = vunpack.c.l.b16 %v35
  %v133 = vunpack.c.h.b16 %v35
  %v134 = vunpack.c.l.b16 %v36
  %v135 = vunpack.c.l.b16 %v37
  %v136 = vunpack.c.h.b16 %v37
  %v137 = vunpack.c.l.b16 %v38
  %v138 = vunpack.c.l.b16 %v39
  %v139 = vunpack.c.h.b16 %v39
  %v140 = vunpack.c.l.b16 %v40
  %v141 = vunpack.c.l.b16 %v41
  %v142 = vunpack.c.h.b16 %v41
  %v143 = vunpack.c.l.b16 %v42
  %v144 = vunpack.c.l.b16 %v43
  %v145 = vunpack.c.h.b16 %v43
  %v146 = vunpack.c.l.b16 %v44
  %v147 = vunpack.c.l.b16 %v45
  %v148 = vunpack.c.h.b16 %v45
  %v149 = vunpack.c.l.b16 %v46
  %v150 = vunpack.c.l.b16 %v47
  %v151 = vunpack.c.h.b16 %v47
  %v152 = vunpack.c.l.b16 %v48
  %v153 = vunpack.c.l.b16 %v49
  %v154 = vunpack.c.h.b16 %v49
  %v155 = vunpack.c.l.b16 %v50
  %v156 = vunpack.c.l.b16 %v51
  %v157 = vunpack.c.h.b16 %v51
  %v158 = vunpack.c.l.b16 %v52
  %v159 = vunpack.c.l.b16 %v53
  %v160 = vunpack.c.h.b16 %v53
  %v161 = vunpack.c.l.b16 %v54
  %v162 = vunpack.c.l.b16 %v55
  %v163 = vunpack.c.h.b16 %v55
  %v164 = vunpack.c.l.b16 %v56
  %v165 = vunpack.c.l.b16 %v57
  %v166 = vunpack.c.h.b16 %v57
  %v167 = vunpack.c.l.b16 %v58
  %v168 = vunpack.c.l.b16 %v59
  %v169 = vunpack.c.h.b16 %v59
  %v170 = vunpack.c.l.b16 %v60
  %v171 = vunpack.c.l.b16 %v61
  %v172 = vunpack.c.h.b16 %v61
  %v173 = vunpack.c.l.b16 %v62
  %v174 = vunpack.c.l.b16 %v63
  %v175 = vunpack.c.h.b16 %v63
  %v176 = vunpack.c.l.b16 %v64
  %v177 = vpack.c.b16 %v132, %v129
  %v178 = vpack.c.b16 %v133, %v130
  %v179 = vpack.c.b16 %v134, %v131
  %v180 = vpack.c.b16 %v138, %v135
  %v181 = vpack.c.b16 %v139, %v136
  %v182 = vpack.c.b16 %v140, %v137
  %v183 = vpack.c.b16 %v144, %v141
  %v184 = vpack.c.b16 %v145, %v142
  %v185 = vpack.c.b16 %v146, %v143
  %v186 = vpack.c.b16 %v150, %v147
  %v187 = vpack.c.b16 %v151, %v148
  %v188 = vpack.c.b16 %v152, %v149
  %v189 = vpack.c.b16 %v156, %v153
  %v190 = vpack.c.b16 %v157, %v154
  %v191 = vpack.c.b16 %v158, %v155
  %v192 = vpack.c.b16 %v162, %v159
  %v193 = vpack.c.b16 %v163, %v160
  %v194 = vpack.c.b16 %v164, %v161
  %v195 = vpack.c.b16 %v168, %v165
  %v196 = vpack.c.b16 %v169, %v166
  %v197 = vpack.c.b16 %v170, %v167
  %v198 = vpack.c.b16 %v174, %v171
  %v199 = vpack.c.b16 %v175, %v172
  %v200 = vpack.c.b16 %v176, %v173
  %225 = vmatpush.bf16.msra.mxu0 %v198
  %226 = vmatpush.bf16.msra.mxu0 %v195
  %227 = vmatpush.bf16.msra.mxu0 %v192
  %228 = vmatpush.bf16.msra.mxu0 %v189
  %229 = vmatpush.bf16.msra.mxu0 %v186
  %230 = vmatpush.bf16.msra.mxu0 %v183
  %231 = vmatpush.bf16.msra.mxu0 %v180
  %232 = vmatpush.bf16.msra.mxu0 %v177
  %233 = vmatmul.bf16.gmra.mxu0 %v89
  %v234 = vpop.f32.mrf.mxu0
  %v235 = vadd.f32 %v67, %v234
  %v236 = vpop.f32.mrf.mxu0
  %v237 = vadd.f32 %v67, %v236
  %238 = vmatmul.bf16.gmra.mxu0 %v90
  %v239 = vpop.f32.mrf.mxu0
  %v240 = vadd.f32 %v67, %v239
  %v241 = vpop.f32.mrf.mxu0
  %v242 = vadd.f32 %v67, %v241
  %243 = vmatmul.bf16.gmra.mxu0 %v91
  %v244 = vpop.f32.mrf.mxu0
  %v245 = vadd.f32 %v67, %v244
  %v246 = vpop.f32.mrf.mxu0
  %v247 = vadd.f32 %v67, %v246
  %248 = vmatmul.bf16.gmra.mxu0 %v92
  %v249 = vpop.f32.mrf.mxu0
  %v250 = vadd.f32 %v67, %v249
  %v251 = vpop.f32.mrf.mxu0
  %v252 = vadd.f32 %v67, %v251
  %253 = vdwg.mxu0
  %254 = vmatpush.bf16.msra.mxu0 %v199
  %255 = vmatpush.bf16.msra.mxu0 %v196
  %256 = vmatpush.bf16.msra.mxu0 %v193
  %257 = vmatpush.bf16.msra.mxu0 %v190
  %258 = vmatpush.bf16.msra.mxu0 %v187
  %259 = vmatpush.bf16.msra.mxu0 %v184
  %260 = vmatpush.bf16.msra.mxu0 %v181
  %261 = vmatpush.bf16.msra.mxu0 %v178
  %262 = vmatmul.bf16.gmra.mxu0 %v89
  %v263 = vpop.f32.mrf.mxu0
  %v264 = vadd.f32 %v68, %v263
  %v265 = vpop.f32.mrf.mxu0
  %v266 = vadd.f32 %v68, %v265
  %267 = vmatmul.bf16.gmra.mxu0 %v90
  %v268 = vpop.f32.mrf.mxu0
  %v269 = vadd.f32 %v68, %v268
  %v270 = vpop.f32.mrf.mxu0
  %v271 = vadd.f32 %v68, %v270
  %272 = vmatmul.bf16.gmra.mxu0 %v91
  %v273 = vpop.f32.mrf.mxu0
  %v274 = vadd.f32 %v68, %v273
  %v275 = vpop.f32.mrf.mxu0
  %v276 = vadd.f32 %v68, %v275
  %277 = vmatmul.bf16.gmra.mxu0 %v92
  %v278 = vpop.f32.mrf.mxu0
  %v279 = vadd.f32 %v68, %v278
  %v280 = vpop.f32.mrf.mxu0
  %v281 = vadd.f32 %v68, %v280
  %282 = vdwg.mxu0
  %283 = vmatpush.bf16.msra.mxu0 %v200
  %284 = vmatpush.bf16.msra.mxu0 %v197
  %285 = vmatpush.bf16.msra.mxu0 %v194
  %286 = vmatpush.bf16.msra.mxu0 %v191
  %287 = vmatpush.bf16.msra.mxu0 %v188
  %288 = vmatpush.bf16.msra.mxu0 %v185
  %289 = vmatpush.bf16.msra.mxu0 %v182
  %290 = vmatpush.bf16.msra.mxu0 %v179
  %291 = vmatmul.bf16.gmra.mxu0 %v89
  %v292 = vpop.f32.mrf.mxu0
  %v293 = vadd.f32 %v69, %v292
  %v294 = vpop.f32.mrf.mxu0
  %v295 = vadd.f32 %v69, %v294
  %296 = vmatmul.bf16.gmra.mxu0 %v90
  %v297 = vpop.f32.mrf.mxu0
  %v298 = vadd.f32 %v69, %v297
  %v299 = vpop.f32.mrf.mxu0
  %v300 = vadd.f32 %v69, %v299
  %301 = vmatmul.bf16.gmra.mxu0 %v91
  %v302 = vpop.f32.mrf.mxu0
  %v303 = vadd.f32 %v69, %v302
  %v304 = vpop.f32.mrf.mxu0
  %v305 = vadd.f32 %v69, %v304
  %306 = vmatmul.bf16.gmra.mxu0 %v92
  %v307 = vpop.f32.mrf.mxu0
  %v308 = vadd.f32 %v69, %v307
  %v309 = vpop.f32.mrf.mxu0
  %v310 = vadd.f32 %v69, %v309
  %311 = vdwg.mxu0
  %312 = vst [vmem:[#allocation2] sm:$0xff] %v235
  %313 = vst [vmem:[#allocation2 + $0x8] sm:$0xff] %v264
  %314 = vst [vmem:[#allocation2 + $0x10] sm:$0xff] %v293
  %315 = vst [vmem:[#allocation2 + $0x18] sm:$0xff] %v237
  %316 = vst [vmem:[#allocation2 + $0x20] sm:$0xff] %v266
  %317 = vst [vmem:[#allocation2 + $0x28] sm:$0xff] %v295
  %318 = vst [vmem:[#allocation2 + $0x30] sm:$0xff] %v240
  %319 = vst [vmem:[#allocation2 + $0x38] sm:$0xff] %v269
  %320 = vst [vmem:[#allocation2 + $0x40] sm:$0xff] %v298
  %321 = vst [vmem:[#allocation2 + $0x48] sm:$0xff] %v242
  %322 = vst [vmem:[#allocation2 + $0x50] sm:$0xff] %v271
  %323 = vst [vmem:[#allocation2 + $0x58] sm:$0xff] %v300
  %324 = vst [vmem:[#allocation2 + $0x60] sm:$0xff] %v245
  %325 = vst [vmem:[#allocation2 + $0x68] sm:$0xff] %v274
  %326 = vst [vmem:[#allocation2 + $0x70] sm:$0xff] %v303
  %327 = vst [vmem:[#allocation2 + $0x78] sm:$0xff] %v247
  %328 = vst [vmem:[#allocation2 + $0x80] sm:$0xff] %v276
  %329 = vst [vmem:[#allocation2 + $0x88] sm:$0xff] %v305
  %330 = vst [vmem:[#allocation2 + $0x90] sm:$0xff] %v250
  %331 = vst [vmem:[#allocation2 + $0x98] sm:$0xff] %v279
  %332 = vst [vmem:[#allocation2 + $0xa0] sm:$0xff] %v308
  %333 = vst [vmem:[#allocation2 + $0xa8] sm:$0xff] %v252
  %334 = vst [vmem:[#allocation2 + $0xb0] sm:$0xff] %v281
  %335 = vst [vmem:[#allocation2 + $0xb8] sm:$0xff] %v310
  %v336 = vld [vmem:[%s2] sm:$0xff]
  %v337 = vld [vmem:[%s2 + $0x8] sm:$0xf]
  %v338 = vld [vmem:[%s2 + $0xc] sm:$0xff]
  %v339 = vld [vmem:[%s2 + $0x14] sm:$0xf]
  %v340 = vld [vmem:[%s2 + $0x18] sm:$0xff]
  %v341 = vld [vmem:[%s2 + $0x20] sm:$0xf]
  %v342 = vld [vmem:[%s2 + $0x24] sm:$0xff]
  %v343 = vld [vmem:[%s2 + $0x2c] sm:$0xf]
  %v344 = vld [vmem:[%s2 + $0x30] sm:$0xff]
  %v345 = vld [vmem:[%s2 + $0x38] sm:$0xf]
  %v346 = vld [vmem:[%s2 + $0x3c] sm:$0xff]
  %v347 = vld [vmem:[%s2 + $0x44] sm:$0xf]
  %v348 = vld [vmem:[%s2 + $0x48] sm:$0xff]
  %v349 = vld [vmem:[%s2 + $0x50] sm:$0xf]
  %v350 = vld [vmem:[%s2 + $0x54] sm:$0xff]
  %v351 = vld [vmem:[%s2 + $0x5c] sm:$0xf]
  %v352 = vld [vmem:[%s2 + $0x60] sm:$0xff]
  %v353 = vld [vmem:[%s2 + $0x68] sm:$0xf]
  %v354 = vld [vmem:[%s2 + $0x6c] sm:$0xff]
  %v355 = vld [vmem:[%s2 + $0x74] sm:$0xf]
  %v356 = vld [vmem:[%s2 + $0x78] sm:$0xff]
  %v357 = vld [vmem:[%s2 + $0x80] sm:$0xf]
  %v358 = vld [vmem:[%s2 + $0x84] sm:$0xff]
  %v359 = vld [vmem:[%s2 + $0x8c] sm:$0xf]
  %v360 = vld [vmem:[%s2 + $0x90] sm:$0xff]
  %v361 = vld [vmem:[%s2 + $0x98] sm:$0xf]
  %v362 = vld [vmem:[%s2 + $0x9c] sm:$0xff]
  %v363 = vld [vmem:[%s2 + $0xa4] sm:$0xf]
  %v364 = vld [vmem:[%s2 + $0xa8] sm:$0xff]
  %v365 = vld [vmem:[%s2 + $0xb0] sm:$0xf]
  %v366 = vld [vmem:[%s2 + $0xb4] sm:$0xff]
  %v367 = vld [vmem:[%s2 + $0xbc] sm:$0xf]
  %v368 = vld [vmem:[%s4] sm:$0x1]
  %v370 = vperm.slane %v368, 0
  %v372 = vld [vmem:[#allocation3] sm:$0xff]
  %s373 = smul.u32 0, 3
  %s374 = smul.addr %s373, 8
  %s375 = scalar_lea.vmem [#allocation2], %s374
  %v376 = vld [vmem:[%s375] sm:$0xff]
  %v377 = vld [vmem:[%s375 + $0x8] sm:$0xff]
  %v378 = vld [vmem:[%s375 + $0x10] sm:$0xff]
  %v379 = vpack.c.bf16 %v372, %v372
  %v412 = vunpack.c.l.b16 %v336
  %v413 = vunpack.c.h.b16 %v336
  %v414 = vunpack.c.l.b16 %v337
  %v415 = vunpack.c.l.b16 %v338
  %v416 = vunpack.c.h.b16 %v338
  %v417 = vunpack.c.l.b16 %v339
  %v418 = vunpack.c.l.b16 %v340
  %v419 = vunpack.c.h.b16 %v340
  %v420 = vunpack.c.l.b16 %v341
  %v421 = vunpack.c.l.b16 %v342
  %v422 = vunpack.c.h.b16 %v342
  %v423 = vunpack.c.l.b16 %v343
  %v424 = vunpack.c.l.b16 %v344
  %v425 = vunpack.c.h.b16 %v344
  %v426 = vunpack.c.l.b16 %v345
  %v427 = vunpack.c.l.b16 %v346
  %v428 = vunpack.c.h.b16 %v346
  %v429 = vunpack.c.l.b16 %v347
  %v430 = vunpack.c.l.b16 %v348
  %v431 = vunpack.c.h.b16 %v348
  %v432 = vunpack.c.l.b16 %v349
  %v433 = vunpack.c.l.b16 %v350
  %v434 = vunpack.c.h.b16 %v350
  %v435 = vunpack.c.l.b16 %v351
  %v436 = vunpack.c.l.b16 %v352
  %v437 = vunpack.c.h.b16 %v352
  %v438 = vunpack.c.l.b16 %v353
  %v439 = vunpack.c.l.b16 %v354
  %v440 = vunpack.c.h.b16 %v354
  %v441 = vunpack.c.l.b16 %v355
  %v442 = vunpack.c.l.b16 %v356
  %v443 = vunpack.c.h.b16 %v356
  %v444 = vunpack.c.l.b16 %v357
  %v445 = vunpack.c.l.b16 %v358
  %v446 = vunpack.c.h.b16 %v358
  %v447 = vunpack.c.l.b16 %v359
  %v448 = vunpack.c.l.b16 %v360
  %v449 = vunpack.c.h.b16 %v360
  %v450 = vunpack.c.l.b16 %v361
  %v451 = vunpack.c.l.b16 %v362
  %v452 = vunpack.c.h.b16 %v362
  %v453 = vunpack.c.l.b16 %v363
  %v454 = vunpack.c.l.b16 %v364
  %v455 = vunpack.c.h.b16 %v364
  %v456 = vunpack.c.l.b16 %v365
  %v457 = vunpack.c.l.b16 %v366
  %v458 = vunpack.c.h.b16 %v366
  %v459 = vunpack.c.l.b16 %v367
  %v460 = vpack.c.b16 %v415, %v412
  %v461 = vpack.c.b16 %v416, %v413
  %v462 = vpack.c.b16 %v417, %v414
  %v463 = vpack.c.b16 %v421, %v418
  %v464 = vpack.c.b16 %v422, %v419
  %v465 = vpack.c.b16 %v423, %v420
  %v466 = vpack.c.b16 %v427, %v424
  %v467 = vpack.c.b16 %v428, %v425
  %v468 = vpack.c.b16 %v429, %v426
  %v469 = vpack.c.b16 %v433, %v430
  %v470 = vpack.c.b16 %v434, %v431
  %v471 = vpack.c.b16 %v435, %v432
  %v472 = vpack.c.b16 %v439, %v436
  %v473 = vpack.c.b16 %v440, %v437
  %v474 = vpack.c.b16 %v441, %v438
  %v475 = vpack.c.b16 %v445, %v442
  %v476 = vpack.c.b16 %v446, %v443
  %v477 = vpack.c.b16 %v447, %v444
  %v478 = vpack.c.b16 %v451, %v448
  %v479 = vpack.c.b16 %v452, %v449
  %v480 = vpack.c.b16 %v453, %v450
  %v481 = vpack.c.b16 %v457, %v454
  %v482 = vpack.c.b16 %v458, %v455
  %v483 = vpack.c.b16 %v459, %v456
  %508 = vmatpush.bf16.msra.mxu0 %v481
  %509 = vmatpush.bf16.msra.mxu0 %v478
  %510 = vmatpush.bf16.msra.mxu0 %v475
  %511 = vmatpush.bf16.msra.mxu0 %v472
  %512 = vmatpush.bf16.msra.mxu0 %v469
  %513 = vmatpush.bf16.msra.mxu0 %v466
  %514 = vmatpush.bf16.msra.mxu0 %v463
  %515 = vmatpush.bf16.msra.mxu0 %v460
  %516 = vmatmul.bf16.gmra.mxu0 %v379
  %v517 = vpop.f32.mrf.mxu0
  %v518 = vadd.f32 0.0, %v517
  %v519 = vpop.f32.mrf.mxu0
  %520 = vdwg.mxu0
  %521 = vmatpush.bf16.msra.mxu0 %v482
  %522 = vmatpush.bf16.msra.mxu0 %v479
  %523 = vmatpush.bf16.msra.mxu0 %v476
  %524 = vmatpush.bf16.msra.mxu0 %v473
  %525 = vmatpush.bf16.msra.mxu0 %v470
  %526 = vmatpush.bf16.msra.mxu0 %v467
  %527 = vmatpush.bf16.msra.mxu0 %v464
  %528 = vmatpush.bf16.msra.mxu0 %v461
  %529 = vmatmul.bf16.gmra.mxu0 %v379
  %v530 = vpop.f32.mrf.mxu0
  %v531 = vadd.f32 0.0, %v530
  %v532 = vpop.f32.mrf.mxu0
  %533 = vdwg.mxu0
  %534 = vmatpush.bf16.msra.mxu0 %v483
  %535 = vmatpush.bf16.msra.mxu0 %v480
  %536 = vmatpush.bf16.msra.mxu0 %v477
  %537 = vmatpush.bf16.msra.mxu0 %v474
  %538 = vmatpush.bf16.msra.mxu0 %v471
  %539 = vmatpush.bf16.msra.mxu0 %v468
  %540 = vmatpush.bf16.msra.mxu0 %v465
  %541 = vmatpush.bf16.msra.mxu0 %v462
  %542 = vmatmul.bf16.gmra.mxu0 %v379
  %v543 = vpop.f32.mrf.mxu0
  %v544 = vadd.f32 0.0, %v543
  %v545 = vpop.f32.mrf.mxu0
  %546 = vdwg.mxu0
  %v547 = vadd.f32 %v376, %v518
  %v548 = vxor.u32 %v547, 2147483648
  %v549 = vmul.f32 %v548, 1.442695
  %v550 = vpow.pop %v549
  %v551 = vadd.f32 %v550, 1.0
  %v552 = vrcp.pop %v551
  %v553 = vmul.f32 %v551, %v552
  %v554 = vsub.f32 1.0, %v553
  %v555 = vmul.f32 %v552, %v554
  %v556 = vadd.f32 %v552, %v555
  %vm557 = vweird.f32 %v551
  %vm558 = vweird.f32 %v552
  %vm559 = vmor %vm557, %vm558
  %v560 = vsel %vm559, %v552, %v556
  %v561 = vand.u32 2147483647, %v551
  %vm562 = vcmp.eq.f32.partialorder %v561, 8.507059e+37
  %v563 = vand.u32 %v551, 2147483648
  %v564 = vor.u32 1.1754944e-38, %v563
  %v565 = vsel %vm562, %v564, %v560
  %v566 = vmul.f32 1.0, %v565
  %v567 = vadd.f32 %v377, %v531
  %v568 = vxor.u32 %v567, 2147483648
  %v569 = vmul.f32 %v568, 1.442695
  %v570 = vpow.pop %v569
  %v571 = vadd.f32 %v570, 1.0
  %v572 = vrcp.pop %v571
  %v573 = vmul.f32 %v571, %v572
  %v574 = vsub.f32 1.0, %v573
  %v575 = vmul.f32 %v572, %v574
  %v576 = vadd.f32 %v572, %v575
  %vm577 = vweird.f32 %v571
  %vm578 = vweird.f32 %v572
  %vm579 = vmor %vm577, %vm578
  %v580 = vsel %vm579, %v572, %v576
  %v581 = vand.u32 2147483647, %v571
  %vm582 = vcmp.eq.f32.partialorder %v581, 8.507059e+37
  %v583 = vand.u32 %v571, 2147483648
  %v584 = vor.u32 1.1754944e-38, %v583
  %v585 = vsel %vm582, %v584, %v580
  %v586 = vmul.f32 1.0, %v585
  %v587 = vadd.f32 %v544, %v370
  %v588 = vmul.f32 %v566, %v587
  %v589 = vadd.f32 %v378, %v588
  %v590 = vtanh.pop %v589
  %v591 = vsub.f32 1.0, %v586
  %v592 = vmul.f32 %v591, %v590
  %v593 = vmul.f32 %v586, %v372
  %v594 = vadd.f32 %v592, %v593
  %595 = vst [vmem:[%s5] sm:$0xff] %v594
  %s596 = smul.u32 1, 3
  %s597 = smul.addr %s596, 8
  %s598 = scalar_lea.vmem [#allocation2], %s597
  %v599 = vld [vmem:[%s598] sm:$0xff]
  %v600 = vld [vmem:[%s598 + $0x8] sm:$0xff]
  %v601 = vld [vmem:[%s598 + $0x10] sm:$0xff]
  %v602 = vpack.c.bf16 %v594, %v594
  %603 = vmatpush.bf16.msra.mxu0 %v481
  %604 = vmatpush.bf16.msra.mxu0 %v478
  %605 = vmatpush.bf16.msra.mxu0 %v475
  %606 = vmatpush.bf16.msra.mxu0 %v472
  %607 = vmatpush.bf16.msra.mxu0 %v469
  %608 = vmatpush.bf16.msra.mxu0 %v466
  %609 = vmatpush.bf16.msra.mxu0 %v463
  %610 = vmatpush.bf16.msra.mxu0 %v460
  %611 = vmatmul.bf16.gmra.mxu0 %v602
  %v612 = vpop.f32.mrf.mxu0
  %v613 = vadd.f32 0.0, %v612
  %v614 = vpop.f32.mrf.mxu0
  %615 = vdwg.mxu0
  %616 = vmatpush.bf16.msra.mxu0 %v482
  %617 = vmatpush.bf16.msra.mxu0 %v479
  %618 = vmatpush.bf16.msra.mxu0 %v476
  %619 = vmatpush.bf16.msra.mxu0 %v473
  %620 = vmatpush.bf16.msra.mxu0 %v470
  %621 = vmatpush.bf16.msra.mxu0 %v467
  %622 = vmatpush.bf16.msra.mxu0 %v464
  %623 = vmatpush.bf16.msra.mxu0 %v461
  %624 = vmatmul.bf16.gmra.mxu0 %v602
  %v625 = vpop.f32.mrf.mxu0
  %v626 = vadd.f32 0.0, %v625
  %v627 = vpop.f32.mrf.mxu0
  %628 = vdwg.mxu0
  %629 = vmatpush.bf16.msra.mxu0 %v483
  %630 = vmatpush.bf16.msra.mxu0 %v480
  %631 = vmatpush.bf16.msra.mxu0 %v477
  %632 = vmatpush.bf16.msra.mxu0 %v474
  %633 = vmatpush.bf16.msra.mxu0 %v471
  %634 = vmatpush.bf16.msra.mxu0 %v468
  %635 = vmatpush.bf16.msra.mxu0 %v465
  %636 = vmatpush.bf16.msra.mxu0 %v462
  %637 = vmatmul.bf16.gmra.mxu0 %v602
  %v638 = vpop.f32.mrf.mxu0
  %v639 = vadd.f32 0.0, %v638
  %v640 = vpop.f32.mrf.mxu0
  %641 = vdwg.mxu0
  %v642 = vadd.f32 %v599, %v613
  %v643 = vxor.u32 %v642, 2147483648
  %v644 = vmul.f32 %v643, 1.442695
  %v645 = vpow.pop %v644
  %v646 = vadd.f32 %v645, 1.0
  %v647 = vrcp.pop %v646
  %v648 = vmul.f32 %v646, %v647
  %v649 = vsub.f32 1.0, %v648
  %v650 = vmul.f32 %v647, %v649
  %v651 = vadd.f32 %v647, %v650
  %vm652 = vweird.f32 %v646
  %vm653 = vweird.f32 %v647
  %vm654 = vmor %vm652, %vm653
  %v655 = vsel %vm654, %v647, %v651
  %v656 = vand.u32 2147483647, %v646
  %vm657 = vcmp.eq.f32.partialorder %v656, 8.507059e+37
  %v658 = vand.u32 %v646, 2147483648
  %v659 = vor.u32 1.1754944e-38, %v658
  %v660 = vsel %vm657, %v659, %v655
  %v661 = vmul.f32 1.0, %v660
  %v662 = vadd.f32 %v600, %v626
  %v663 = vxor.u32 %v662, 2147483648
  %v664 = vmul.f32 %v663, 1.442695
  %v665 = vpow.pop %v664
  %v666 = vadd.f32 %v665, 1.0
  %v667 = vrcp.pop %v666
  %v668 = vmul.f32 %v666, %v667
  %v669 = vsub.f32 1.0, %v668
  %v670 = vmul.f32 %v667, %v669
  %v671 = vadd.f32 %v667, %v670
  %vm672 = vweird.f32 %v666
  %vm673 = vweird.f32 %v667
  %vm674 = vmor %vm672, %vm673
  %v675 = vsel %vm674, %v667, %v671
  %v676 = vand.u32 2147483647, %v666
  %vm677 = vcmp.eq.f32.partialorder %v676, 8.507059e+37
  %v678 = vand.u32 %v666, 2147483648
  %v679 = vor.u32 1.1754944e-38, %v678
  %v680 = vsel %vm677, %v679, %v675
  %v681 = vmul.f32 1.0, %v680
  %v682 = vadd.f32 %v639, %v370
  %v683 = vmul.f32 %v661, %v682
  %v684 = vadd.f32 %v601, %v683
  %v685 = vtanh.pop %v684
  %v686 = vsub.f32 1.0, %v681
  %v687 = vmul.f32 %v686, %v685
  %v688 = vmul.f32 %v681, %v594
  %v689 = vadd.f32 %v687, %v688
  %s690 = scalar_lea.vmem %s5, 8
  %691 = vst [vmem:[%s690] sm:$0xff] %v689
  %s692 = smul.u32 2, 3
  %s693 = smul.addr %s692, 8
  %s694 = scalar_lea.vmem [#allocation2], %s693
  %v695 = vld [vmem:[%s694] sm:$0xff]
  %v696 = vld [vmem:[%s694 + $0x8] sm:$0xff]
  %v697 = vld [vmem:[%s694 + $0x10] sm:$0xff]
  %v698 = vpack.c.bf16 %v689, %v689
  %699 = vmatpush.bf16.msra.mxu0 %v481
  %700 = vmatpush.bf16.msra.mxu0 %v478
  %701 = vmatpush.bf16.msra.mxu0 %v475
  %702 = vmatpush.bf16.msra.mxu0 %v472
  %703 = vmatpush.bf16.msra.mxu0 %v469
  %704 = vmatpush.bf16.msra.mxu0 %v466
  %705 = vmatpush.bf16.msra.mxu0 %v463
  %706 = vmatpush.bf16.msra.mxu0 %v460
  %707 = vmatmul.bf16.gmra.mxu0 %v698
  %v708 = vpop.f32.mrf.mxu0
  %v709 = vadd.f32 0.0, %v708
  %v710 = vpop.f32.mrf.mxu0
  %711 = vdwg.mxu0
  %712 = vmatpush.bf16.msra.mxu0 %v482
  %713 = vmatpush.bf16.msra.mxu0 %v479
  %714 = vmatpush.bf16.msra.mxu0 %v476
  %715 = vmatpush.bf16.msra.mxu0 %v473
  %716 = vmatpush.bf16.msra.mxu0 %v470
  %717 = vmatpush.bf16.msra.mxu0 %v467
  %718 = vmatpush.bf16.msra.mxu0 %v464
  %719 = vmatpush.bf16.msra.mxu0 %v461
  %720 = vmatmul.bf16.gmra.mxu0 %v698
  %v721 = vpop.f32.mrf.mxu0
  %v722 = vadd.f32 0.0, %v721
  %v723 = vpop.f32.mrf.mxu0
  %724 = vdwg.mxu0
  %725 = vmatpush.bf16.msra.mxu0 %v483
  %726 = vmatpush.bf16.msra.mxu0 %v480
  %727 = vmatpush.bf16.msra.mxu0 %v477
  %728 = vmatpush.bf16.msra.mxu0 %v474
  %729 = vmatpush.bf16.msra.mxu0 %v471
  %730 = vmatpush.bf16.msra.mxu0 %v468
  %731 = vmatpush.bf16.msra.mxu0 %v465
  %732 = vmatpush.bf16.msra.mxu0 %v462
  %733 = vmatmul.bf16.gmra.mxu0 %v698
  %v734 = vpop.f32.mrf.mxu0
  %v735 = vadd.f32 0.0, %v734
  %v736 = vpop.f32.mrf.mxu0
  %737 = vdwg.mxu0
  %v738 = vadd.f32 %v695, %v709
  %v739 = vxor.u32 %v738, 2147483648
  %v740 = vmul.f32 %v739, 1.442695
  %v741 = vpow.pop %v740
  %v742 = vadd.f32 %v741, 1.0
  %v743 = vrcp.pop %v742
  %v744 = vmul.f32 %v742, %v743
  %v745 = vsub.f32 1.0, %v744
  %v746 = vmul.f32 %v743, %v745
  %v747 = vadd.f32 %v743, %v746
  %vm748 = vweird.f32 %v742
  %vm749 = vweird.f32 %v743
  %vm750 = vmor %vm748, %vm749
  %v751 = vsel %vm750, %v743, %v747
  %v752 = vand.u32 2147483647, %v742
  %vm753 = vcmp.eq.f32.partialorder %v752, 8.507059e+37
  %v754 = vand.u32 %v742, 2147483648
  %v755 = vor.u32 1.1754944e-38, %v754
  %v756 = vsel %vm753, %v755, %v751
  %v757 = vmul.f32 1.0, %v756
  %v758 = vadd.f32 %v696, %v722
  %v759 = vxor.u32 %v758, 2147483648
  %v760 = vmul.f32 %v759, 1.442695
  %v761 = vpow.pop %v760
  %v762 = vadd.f32 %v761, 1.0
  %v763 = vrcp.pop %v762
  %v764 = vmul.f32 %v762, %v763
  %v765 = vsub.f32 1.0, %v764
  %v766 = vmul.f32 %v763, %v765
  %v767 = vadd.f32 %v763, %v766
  %vm768 = vweird.f32 %v762
  %vm769 = vweird.f32 %v763
  %vm770 = vmor %vm768, %vm769
  %v771 = vsel %vm770, %v763, %v767
  %v772 = vand.u32 2147483647, %v762
  %vm773 = vcmp.eq.f32.partialorder %v772, 8.507059e+37
  %v774 = vand.u32 %v762, 2147483648
  %v775 = vor.u32 1.1754944e-38, %v774
  %v776 = vsel %vm773, %v775, %v771
  %v777 = vmul.f32 1.0, %v776
  %v778 = vadd.f32 %v735, %v370
  %v779 = vmul.f32 %v757, %v778
  %v780 = vadd.f32 %v697, %v779
  %v781 = vtanh.pop %v780
  %v782 = vsub.f32 1.0, %v777
  %v783 = vmul.f32 %v782, %v781
  %v784 = vmul.f32 %v777, %v689
  %v785 = vadd.f32 %v783, %v784
  %s786 = scalar_lea.vmem %s5, 16
  %787 = vst [vmem:[%s786] sm:$0xff] %v785
  %s788 = smul.u32 3, 3
  %s789 = smul.addr %s788, 8
  %s790 = scalar_lea.vmem [#allocation2], %s789
  %v791 = vld [vmem:[%s790] sm:$0xff]
  %v792 = vld [vmem:[%s790 + $0x8] sm:$0xff]
  %v793 = vld [vmem:[%s790 + $0x10] sm:$0xff]
  %v794 = vpack.c.bf16 %v785, %v785
  %795 = vmatpush.bf16.msra.mxu0 %v481
  %796 = vmatpush.bf16.msra.mxu0 %v478
  %797 = vmatpush.bf16.msra.mxu0 %v475
  %798 = vmatpush.bf16.msra.mxu0 %v472
  %799 = vmatpush.bf16.msra.mxu0 %v469
  %800 = vmatpush.bf16.msra.mxu0 %v466
  %801 = vmatpush.bf16.msra.mxu0 %v463
  %802 = vmatpush.bf16.msra.mxu0 %v460
  %803 = vmatmul.bf16.gmra.mxu0 %v794
  %v804 = vpop.f32.mrf.mxu0
  %v805 = vadd.f32 0.0, %v804
  %v806 = vpop.f32.mrf.mxu0
  %807 = vdwg.mxu0
  %808 = vmatpush.bf16.msra.mxu0 %v482
  %809 = vmatpush.bf16.msra.mxu0 %v479
  %810 = vmatpush.bf16.msra.mxu0 %v476
  %811 = vmatpush.bf16.msra.mxu0 %v473
  %812 = vmatpush.bf16.msra.mxu0 %v470
  %813 = vmatpush.bf16.msra.mxu0 %v467
  %814 = vmatpush.bf16.msra.mxu0 %v464
  %815 = vmatpush.bf16.msra.mxu0 %v461
  %816 = vmatmul.bf16.gmra.mxu0 %v794
  %v817 = vpop.f32.mrf.mxu0
  %v818 = vadd.f32 0.0, %v817
  %v819 = vpop.f32.mrf.mxu0
  %820 = vdwg.mxu0
  %821 = vmatpush.bf16.msra.mxu0 %v483
  %822 = vmatpush.bf16.msra.mxu0 %v480
  %823 = vmatpush.bf16.msra.mxu0 %v477
  %824 = vmatpush.bf16.msra.mxu0 %v474
  %825 = vmatpush.bf16.msra.mxu0 %v471
  %826 = vmatpush.bf16.msra.mxu0 %v468
  %827 = vmatpush.bf16.msra.mxu0 %v465
  %828 = vmatpush.bf16.msra.mxu0 %v462
  %829 = vmatmul.bf16.gmra.mxu0 %v794
  %v830 = vpop.f32.mrf.mxu0
  %v831 = vadd.f32 0.0, %v830
  %v832 = vpop.f32.mrf.mxu0
  %833 = vdwg.mxu0
  %v834 = vadd.f32 %v791, %v805
  %v835 = vxor.u32 %v834, 2147483648
  %v836 = vmul.f32 %v835, 1.442695
  %v837 = vpow.pop %v836
  %v838 = vadd.f32 %v837, 1.0
  %v839 = vrcp.pop %v838
  %v840 = vmul.f32 %v838, %v839
  %v841 = vsub.f32 1.0, %v840
  %v842 = vmul.f32 %v839, %v841
  %v843 = vadd.f32 %v839, %v842
  %vm844 = vweird.f32 %v838
  %vm845 = vweird.f32 %v839
  %vm846 = vmor %vm844, %vm845
  %v847 = vsel %vm846, %v839, %v843
  %v848 = vand.u32 2147483647, %v838
  %vm849 = vcmp.eq.f32.partialorder %v848, 8.507059e+37
  %v850 = vand.u32 %v838, 2147483648
  %v851 = vor.u32 1.1754944e-38, %v850
  %v852 = vsel %vm849, %v851, %v847
  %v853 = vmul.f32 1.0, %v852
  %v854 = vadd.f32 %v792, %v818
  %v855 = vxor.u32 %v854, 2147483648
  %v856 = vmul.f32 %v855, 1.442695
  %v857 = vpow.pop %v856
  %v858 = vadd.f32 %v857, 1.0
  %v859 = vrcp.pop %v858
  %v860 = vmul.f32 %v858, %v859
  %v861 = vsub.f32 1.0, %v860
  %v862 = vmul.f32 %v859, %v861
  %v863 = vadd.f32 %v859, %v862
  %vm864 = vweird.f32 %v858
  %vm865 = vweird.f32 %v859
  %vm866 = vmor %vm864, %vm865
  %v867 = vsel %vm866, %v859, %v863
  %v868 = vand.u32 2147483647, %v858
  %vm869 = vcmp.eq.f32.partialorder %v868, 8.507059e+37
  %v870 = vand.u32 %v858, 2147483648
  %v871 = vor.u32 1.1754944e-38, %v870
  %v872 = vsel %vm869, %v871, %v867
  %v873 = vmul.f32 1.0, %v872
  %v874 = vadd.f32 %v831, %v370
  %v875 = vmul.f32 %v853, %v874
  %v876 = vadd.f32 %v793, %v875
  %v877 = vtanh.pop %v876
  %v878 = vsub.f32 1.0, %v873
  %v879 = vmul.f32 %v878, %v877
  %v880 = vmul.f32 %v873, %v785
  %v881 = vadd.f32 %v879, %v880
  %s882 = scalar_lea.vmem %s5, 24
  %883 = vst [vmem:[%s882] sm:$0xff] %v881
  %s884 = smul.u32 4, 3
  %s885 = smul.addr %s884, 8
  %s886 = scalar_lea.vmem [#allocation2], %s885
  %v887 = vld [vmem:[%s886] sm:$0xff]
  %v888 = vld [vmem:[%s886 + $0x8] sm:$0xff]
  %v889 = vld [vmem:[%s886 + $0x10] sm:$0xff]
  %v890 = vpack.c.bf16 %v881, %v881
  %891 = vmatpush.bf16.msra.mxu0 %v481
  %892 = vmatpush.bf16.msra.mxu0 %v478
  %893 = vmatpush.bf16.msra.mxu0 %v475
  %894 = vmatpush.bf16.msra.mxu0 %v472
  %895 = vmatpush.bf16.msra.mxu0 %v469
  %896 = vmatpush.bf16.msra.mxu0 %v466
  %897 = vmatpush.bf16.msra.mxu0 %v463
  %898 = vmatpush.bf16.msra.mxu0 %v460
  %899 = vmatmul.bf16.gmra.mxu0 %v890
  %v900 = vpop.f32.mrf.mxu0
  %v901 = vadd.f32 0.0, %v900
  %v902 = vpop.f32.mrf.mxu0
  %903 = vdwg.mxu0
  %904 = vmatpush.bf16.msra.mxu0 %v482
  %905 = vmatpush.bf16.msra.mxu0 %v479
  %906 = vmatpush.bf16.msra.mxu0 %v476
  %907 = vmatpush.bf16.msra.mxu0 %v473
  %908 = vmatpush.bf16.msra.mxu0 %v470
  %909 = vmatpush.bf16.msra.mxu0 %v467
  %910 = vmatpush.bf16.msra.mxu0 %v464
  %911 = vmatpush.bf16.msra.mxu0 %v461
  %912 = vmatmul.bf16.gmra.mxu0 %v890
  %v913 = vpop.f32.mrf.mxu0
  %v914 = vadd.f32 0.0, %v913
  %v915 = vpop.f32.mrf.mxu0
  %916 = vdwg.mxu0
  %917 = vmatpush.bf16.msra.mxu0 %v483
  %918 = vmatpush.bf16.msra.mxu0 %v480
  %919 = vmatpush.bf16.msra.mxu0 %v477
  %920 = vmatpush.bf16.msra.mxu0 %v474
  %921 = vmatpush.bf16.msra.mxu0 %v471
  %922 = vmatpush.bf16.msra.mxu0 %v468
  %923 = vmatpush.bf16.msra.mxu0 %v465
  %924 = vmatpush.bf16.msra.mxu0 %v462
  %925 = vmatmul.bf16.gmra.mxu0 %v890
  %v926 = vpop.f32.mrf.mxu0
  %v927 = vadd.f32 0.0, %v926
  %v928 = vpop.f32.mrf.mxu0
  %929 = vdwg.mxu0
  %v930 = vadd.f32 %v887, %v901
  %v931 = vxor.u32 %v930, 2147483648
  %v932 = vmul.f32 %v931, 1.442695
  %v933 = vpow.pop %v932
  %v934 = vadd.f32 %v933, 1.0
  %v935 = vrcp.pop %v934
  %v936 = vmul.f32 %v934, %v935
  %v937 = vsub.f32 1.0, %v936
  %v938 = vmul.f32 %v935, %v937
  %v939 = vadd.f32 %v935, %v938
  %vm940 = vweird.f32 %v934
  %vm941 = vweird.f32 %v935
  %vm942 = vmor %vm940, %vm941
  %v943 = vsel %vm942, %v935, %v939
  %v944 = vand.u32 2147483647, %v934
  %vm945 = vcmp.eq.f32.partialorder %v944, 8.507059e+37
  %v946 = vand.u32 %v934, 2147483648
  %v947 = vor.u32 1.1754944e-38, %v946
  %v948 = vsel %vm945, %v947, %v943
  %v949 = vmul.f32 1.0, %v948
  %v950 = vadd.f32 %v888, %v914
  %v951 = vxor.u32 %v950, 2147483648
  %v952 = vmul.f32 %v951, 1.442695
  %v953 = vpow.pop %v952
  %v954 = vadd.f32 %v953, 1.0
  %v955 = vrcp.pop %v954
  %v956 = vmul.f32 %v954, %v955
  %v957 = vsub.f32 1.0, %v956
  %v958 = vmul.f32 %v955, %v957
  %v959 = vadd.f32 %v955, %v958
  %vm960 = vweird.f32 %v954
  %vm961 = vweird.f32 %v955
  %vm962 = vmor %vm960, %vm961
  %v963 = vsel %vm962, %v955, %v959
  %v964 = vand.u32 2147483647, %v954
  %vm965 = vcmp.eq.f32.partialorder %v964, 8.507059e+37
  %v966 = vand.u32 %v954, 2147483648
  %v967 = vor.u32 1.1754944e-38, %v966
  %v968 = vsel %vm965, %v967, %v963
  %v969 = vmul.f32 1.0, %v968
  %v970 = vadd.f32 %v927, %v370
  %v971 = vmul.f32 %v949, %v970
  %v972 = vadd.f32 %v889, %v971
  %v973 = vtanh.pop %v972
  %v974 = vsub.f32 1.0, %v969
  %v975 = vmul.f32 %v974, %v973
  %v976 = vmul.f32 %v969, %v881
  %v977 = vadd.f32 %v975, %v976
  %s978 = scalar_lea.vmem %s5, 32
  %979 = vst [vmem:[%s978] sm:$0xff] %v977
  %s980 = smul.u32 5, 3
  %s981 = smul.addr %s980, 8
  %s982 = scalar_lea.vmem [#allocation2], %s981
  %v983 = vld [vmem:[%s982] sm:$0xff]
  %v984 = vld [vmem:[%s982 + $0x8] sm:$0xff]
  %v985 = vld [vmem:[%s982 + $0x10] sm:$0xff]
  %v986 = vpack.c.bf16 %v977, %v977
  %987 = vmatpush.bf16.msra.mxu0 %v481
  %988 = vmatpush.bf16.msra.mxu0 %v478
  %989 = vmatpush.bf16.msra.mxu0 %v475
  %990 = vmatpush.bf16.msra.mxu0 %v472
  %991 = vmatpush.bf16.msra.mxu0 %v469
  %992 = vmatpush.bf16.msra.mxu0 %v466
  %993 = vmatpush.bf16.msra.mxu0 %v463
  %994 = vmatpush.bf16.msra.mxu0 %v460
  %995 = vmatmul.bf16.gmra.mxu0 %v986
  %v996 = vpop.f32.mrf.mxu0
  %v997 = vadd.f32 0.0, %v996
  %v998 = vpop.f32.mrf.mxu0
  %999 = vdwg.mxu0
  %1000 = vmatpush.bf16.msra.mxu0 %v482
  %1001 = vmatpush.bf16.msra.mxu0 %v479
  %1002 = vmatpush.bf16.msra.mxu0 %v476
  %1003 = vmatpush.bf16.msra.mxu0 %v473
  %1004 = vmatpush.bf16.msra.mxu0 %v470
  %1005 = vmatpush.bf16.msra.mxu0 %v467
  %1006 = vmatpush.bf16.msra.mxu0 %v464
  %1007 = vmatpush.bf16.msra.mxu0 %v461
  %1008 = vmatmul.bf16.gmra.mxu0 %v986
  %v1009 = vpop.f32.mrf.mxu0
  %v1010 = vadd.f32 0.0, %v1009
  %v1011 = vpop.f32.mrf.mxu0
  %1012 = vdwg.mxu0
  %1013 = vmatpush.bf16.msra.mxu0 %v483
  %1014 = vmatpush.bf16.msra.mxu0 %v480
  %1015 = vmatpush.bf16.msra.mxu0 %v477
  %1016 = vmatpush.bf16.msra.mxu0 %v474
  %1017 = vmatpush.bf16.msra.mxu0 %v471
  %1018 = vmatpush.bf16.msra.mxu0 %v468
  %1019 = vmatpush.bf16.msra.mxu0 %v465
  %1020 = vmatpush.bf16.msra.mxu0 %v462
  %1021 = vmatmul.bf16.gmra.mxu0 %v986
  %v1022 = vpop.f32.mrf.mxu0
  %v1023 = vadd.f32 0.0, %v1022
  %v1024 = vpop.f32.mrf.mxu0
  %1025 = vdwg.mxu0
  %v1026 = vadd.f32 %v983, %v997
  %v1027 = vxor.u32 %v1026, 2147483648
  %v1028 = vmul.f32 %v1027, 1.442695
  %v1029 = vpow.pop %v1028
  %v1030 = vadd.f32 %v1029, 1.0
  %v1031 = vrcp.pop %v1030
  %v1032 = vmul.f32 %v1030, %v1031
  %v1033 = vsub.f32 1.0, %v1032
  %v1034 = vmul.f32 %v1031, %v1033
  %v1035 = vadd.f32 %v1031, %v1034
  %vm1036 = vweird.f32 %v1030
  %vm1037 = vweird.f32 %v1031
  %vm1038 = vmor %vm1036, %vm1037
  %v1039 = vsel %vm1038, %v1031, %v1035
  %v1040 = vand.u32 2147483647, %v1030
  %vm1041 = vcmp.eq.f32.partialorder %v1040, 8.507059e+37
  %v1042 = vand.u32 %v1030, 2147483648
  %v1043 = vor.u32 1.1754944e-38, %v1042
  %v1044 = vsel %vm1041, %v1043, %v1039
  %v1045 = vmul.f32 1.0, %v1044
  %v1046 = vadd.f32 %v984, %v1010
  %v1047 = vxor.u32 %v1046, 2147483648
  %v1048 = vmul.f32 %v1047, 1.442695
  %v1049 = vpow.pop %v1048
  %v1050 = vadd.f32 %v1049, 1.0
  %v1051 = vrcp.pop %v1050
  %v1052 = vmul.f32 %v1050, %v1051
  %v1053 = vsub.f32 1.0, %v1052
  %v1054 = vmul.f32 %v1051, %v1053
  %v1055 = vadd.f32 %v1051, %v1054
  %vm1056 = vweird.f32 %v1050
  %vm1057 = vweird.f32 %v1051
  %vm1058 = vmor %vm1056, %vm1057
  %v1059 = vsel %vm1058, %v1051, %v1055
  %v1060 = vand.u32 2147483647, %v1050
  %vm1061 = vcmp.eq.f32.partialorder %v1060, 8.507059e+37
  %v1062 = vand.u32 %v1050, 2147483648
  %v1063 = vor.u32 1.1754944e-38, %v1062
  %v1064 = vsel %vm1061, %v1063, %v1059
  %v1065 = vmul.f32 1.0, %v1064
  %v1066 = vadd.f32 %v1023, %v370
  %v1067 = vmul.f32 %v1045, %v1066
  %v1068 = vadd.f32 %v985, %v1067
  %v1069 = vtanh.pop %v1068
  %v1070 = vsub.f32 1.0, %v1065
  %v1071 = vmul.f32 %v1070, %v1069
  %v1072 = vmul.f32 %v1065, %v977
  %v1073 = vadd.f32 %v1071, %v1072
  %s1074 = scalar_lea.vmem %s5, 40
  %1075 = vst [vmem:[%s1074] sm:$0xff] %v1073
  %s1076 = smul.u32 6, 3
  %s1077 = smul.addr %s1076, 8
  %s1078 = scalar_lea.vmem [#allocation2], %s1077
  %v1079 = vld [vmem:[%s1078] sm:$0xff]
  %v1080 = vld [vmem:[%s1078 + $0x8] sm:$0xff]
  %v1081 = vld [vmem:[%s1078 + $0x10] sm:$0xff]
  %v1082 = vpack.c.bf16 %v1073, %v1073
  %1083 = vmatpush.bf16.msra.mxu0 %v481
  %1084 = vmatpush.bf16.msra.mxu0 %v478
  %1085 = vmatpush.bf16.msra.mxu0 %v475
  %1086 = vmatpush.bf16.msra.mxu0 %v472
  %1087 = vmatpush.bf16.msra.mxu0 %v469
  %1088 = vmatpush.bf16.msra.mxu0 %v466
  %1089 = vmatpush.bf16.msra.mxu0 %v463
  %1090 = vmatpush.bf16.msra.mxu0 %v460
  %1091 = vmatmul.bf16.gmra.mxu0 %v1082
  %v1092 = vpop.f32.mrf.mxu0
  %v1093 = vadd.f32 0.0, %v1092
  %v1094 = vpop.f32.mrf.mxu0
  %1095 = vdwg.mxu0
  %1096 = vmatpush.bf16.msra.mxu0 %v482
  %1097 = vmatpush.bf16.msra.mxu0 %v479
  %1098 = vmatpush.bf16.msra.mxu0 %v476
  %1099 = vmatpush.bf16.msra.mxu0 %v473
  %1100 = vmatpush.bf16.msra.mxu0 %v470
  %1101 = vmatpush.bf16.msra.mxu0 %v467
  %1102 = vmatpush.bf16.msra.mxu0 %v464
  %1103 = vmatpush.bf16.msra.mxu0 %v461
  %1104 = vmatmul.bf16.gmra.mxu0 %v1082
  %v1105 = vpop.f32.mrf.mxu0
  %v1106 = vadd.f32 0.0, %v1105
  %v1107 = vpop.f32.mrf.mxu0
  %1108 = vdwg.mxu0
  %1109 = vmatpush.bf16.msra.mxu0 %v483
  %1110 = vmatpush.bf16.msra.mxu0 %v480
  %1111 = vmatpush.bf16.msra.mxu0 %v477
  %1112 = vmatpush.bf16.msra.mxu0 %v474
  %1113 = vmatpush.bf16.msra.mxu0 %v471
  %1114 = vmatpush.bf16.msra.mxu0 %v468
  %1115 = vmatpush.bf16.msra.mxu0 %v465
  %1116 = vmatpush.bf16.msra.mxu0 %v462
  %1117 = vmatmul.bf16.gmra.mxu0 %v1082
  %v1118 = vpop.f32.mrf.mxu0
  %v1119 = vadd.f32 0.0, %v1118
  %v1120 = vpop.f32.mrf.mxu0
  %1121 = vdwg.mxu0
  %v1122 = vadd.f32 %v1079, %v1093
  %v1123 = vxor.u32 %v1122, 2147483648
  %v1124 = vmul.f32 %v1123, 1.442695
  %v1125 = vpow.pop %v1124
  %v1126 = vadd.f32 %v1125, 1.0
  %v1127 = vrcp.pop %v1126
  %v1128 = vmul.f32 %v1126, %v1127
  %v1129 = vsub.f32 1.0, %v1128
  %v1130 = vmul.f32 %v1127, %v1129
  %v1131 = vadd.f32 %v1127, %v1130
  %vm1132 = vweird.f32 %v1126
  %vm1133 = vweird.f32 %v1127
  %vm1134 = vmor %vm1132, %vm1133
  %v1135 = vsel %vm1134, %v1127, %v1131
  %v1136 = vand.u32 2147483647, %v1126
  %vm1137 = vcmp.eq.f32.partialorder %v1136, 8.507059e+37
  %v1138 = vand.u32 %v1126, 2147483648
  %v1139 = vor.u32 1.1754944e-38, %v1138
  %v1140 = vsel %vm1137, %v1139, %v1135
  %v1141 = vmul.f32 1.0, %v1140
  %v1142 = vadd.f32 %v1080, %v1106
  %v1143 = vxor.u32 %v1142, 2147483648
  %v1144 = vmul.f32 %v1143, 1.442695
  %v1145 = vpow.pop %v1144
  %v1146 = vadd.f32 %v1145, 1.0
  %v1147 = vrcp.pop %v1146
  %v1148 = vmul.f32 %v1146, %v1147
  %v1149 = vsub.f32 1.0, %v1148
  %v1150 = vmul.f32 %v1147, %v1149
  %v1151 = vadd.f32 %v1147, %v1150
  %vm1152 = vweird.f32 %v1146
  %vm1153 = vweird.f32 %v1147
  %vm1154 = vmor %vm1152, %vm1153
  %v1155 = vsel %vm1154, %v1147, %v1151
  %v1156 = vand.u32 2147483647, %v1146
  %vm1157 = vcmp.eq.f32.partialorder %v1156, 8.507059e+37
  %v1158 = vand.u32 %v1146, 2147483648
  %v1159 = vor.u32 1.1754944e-38, %v1158
  %v1160 = vsel %vm1157, %v1159, %v1155
  %v1161 = vmul.f32 1.0, %v1160
  %v1162 = vadd.f32 %v1119, %v370
  %v1163 = vmul.f32 %v1141, %v1162
  %v1164 = vadd.f32 %v1081, %v1163
  %v1165 = vtanh.pop %v1164
  %v1166 = vsub.f32 1.0, %v1161
  %v1167 = vmul.f32 %v1166, %v1165
  %v1168 = vmul.f32 %v1161, %v1073
  %v1169 = vadd.f32 %v1167, %v1168
  %s1170 = scalar_lea.vmem %s5, 48
  %1171 = vst [vmem:[%s1170] sm:$0xff] %v1169
  %s1172 = smul.u32 7, 3
  %s1173 = smul.addr %s1172, 8
  %s1174 = scalar_lea.vmem [#allocation2], %s1173
  %v1175 = vld [vmem:[%s1174] sm:$0xff]
  %v1176 = vld [vmem:[%s1174 + $0x8] sm:$0xff]
  %v1177 = vld [vmem:[%s1174 + $0x10] sm:$0xff]
  %v1178 = vpack.c.bf16 %v1169, %v1169
  %1179 = vmatpush.bf16.msra.mxu0 %v481
  %1180 = vmatpush.bf16.msra.mxu0 %v478
  %1181 = vmatpush.bf16.msra.mxu0 %v475
  %1182 = vmatpush.bf16.msra.mxu0 %v472
  %1183 = vmatpush.bf16.msra.mxu0 %v469
  %1184 = vmatpush.bf16.msra.mxu0 %v466
  %1185 = vmatpush.bf16.msra.mxu0 %v463
  %1186 = vmatpush.bf16.msra.mxu0 %v460
  %1187 = vmatmul.bf16.gmra.mxu0 %v1178
  %v1188 = vpop.f32.mrf.mxu0
  %v1189 = vadd.f32 0.0, %v1188
  %v1190 = vpop.f32.mrf.mxu0
  %1191 = vdwg.mxu0
  %1192 = vmatpush.bf16.msra.mxu0 %v482
  %1193 = vmatpush.bf16.msra.mxu0 %v479
  %1194 = vmatpush.bf16.msra.mxu0 %v476
  %1195 = vmatpush.bf16.msra.mxu0 %v473
  %1196 = vmatpush.bf16.msra.mxu0 %v470
  %1197 = vmatpush.bf16.msra.mxu0 %v467
  %1198 = vmatpush.bf16.msra.mxu0 %v464
  %1199 = vmatpush.bf16.msra.mxu0 %v461
  %1200 = vmatmul.bf16.gmra.mxu0 %v1178
  %v1201 = vpop.f32.mrf.mxu0
  %v1202 = vadd.f32 0.0, %v1201
  %v1203 = vpop.f32.mrf.mxu0
  %1204 = vdwg.mxu0
  %1205 = vmatpush.bf16.msra.mxu0 %v483
  %1206 = vmatpush.bf16.msra.mxu0 %v480
  %1207 = vmatpush.bf16.msra.mxu0 %v477
  %1208 = vmatpush.bf16.msra.mxu0 %v474
  %1209 = vmatpush.bf16.msra.mxu0 %v471
  %1210 = vmatpush.bf16.msra.mxu0 %v468
  %1211 = vmatpush.bf16.msra.mxu0 %v465
  %1212 = vmatpush.bf16.msra.mxu0 %v462
  %1213 = vmatmul.bf16.gmra.mxu0 %v1178
  %v1214 = vpop.f32.mrf.mxu0
  %v1215 = vadd.f32 0.0, %v1214
  %v1216 = vpop.f32.mrf.mxu0
  %1217 = vdwg.mxu0
  %v1218 = vadd.f32 %v1175, %v1189
  %v1219 = vxor.u32 %v1218, 2147483648
  %v1220 = vmul.f32 %v1219, 1.442695
  %v1221 = vpow.pop %v1220
  %v1222 = vadd.f32 %v1221, 1.0
  %v1223 = vrcp.pop %v1222
  %v1224 = vmul.f32 %v1222, %v1223
  %v1225 = vsub.f32 1.0, %v1224
  %v1226 = vmul.f32 %v1223, %v1225
  %v1227 = vadd.f32 %v1223, %v1226
  %vm1228 = vweird.f32 %v1222
  %vm1229 = vweird.f32 %v1223
  %vm1230 = vmor %vm1228, %vm1229
  %v1231 = vsel %vm1230, %v1223, %v1227
  %v1232 = vand.u32 2147483647, %v1222
  %vm1233 = vcmp.eq.f32.partialorder %v1232, 8.507059e+37
  %v1234 = vand.u32 %v1222, 2147483648
  %v1235 = vor.u32 1.1754944e-38, %v1234
  %v1236 = vsel %vm1233, %v1235, %v1231
  %v1237 = vmul.f32 1.0, %v1236
  %v1238 = vadd.f32 %v1176, %v1202
  %v1239 = vxor.u32 %v1238, 2147483648
  %v1240 = vmul.f32 %v1239, 1.442695
  %v1241 = vpow.pop %v1240
  %v1242 = vadd.f32 %v1241, 1.0
  %v1243 = vrcp.pop %v1242
  %v1244 = vmul.f32 %v1242, %v1243
  %v1245 = vsub.f32 1.0, %v1244
  %v1246 = vmul.f32 %v1243, %v1245
  %v1247 = vadd.f32 %v1243, %v1246
  %vm1248 = vweird.f32 %v1242
  %vm1249 = vweird.f32 %v1243
  %vm1250 = vmor %vm1248, %vm1249
  %v1251 = vsel %vm1250, %v1243, %v1247
  %v1252 = vand.u32 2147483647, %v1242
  %vm1253 = vcmp.eq.f32.partialorder %v1252, 8.507059e+37
  %v1254 = vand.u32 %v1242, 2147483648
  %v1255 = vor.u32 1.1754944e-38, %v1254
  %v1256 = vsel %vm1253, %v1255, %v1251
  %v1257 = vmul.f32 1.0, %v1256
  %v1258 = vadd.f32 %v1215, %v370
  %v1259 = vmul.f32 %v1237, %v1258
  %v1260 = vadd.f32 %v1177, %v1259
  %v1261 = vtanh.pop %v1260
  %v1262 = vsub.f32 1.0, %v1257
  %v1263 = vmul.f32 %v1262, %v1261
  %v1264 = vmul.f32 %v1257, %v1169
  %v1265 = vadd.f32 %v1263, %v1264
  %s1266 = scalar_lea.vmem %s5, 56
  %1267 = vst [vmem:[%s1266] sm:$0xff] %v1265
  %1268 = vst [vmem:[#allocation3] sm:$0xff] %v1265
  // Predicated region
  $region26: #{encoder_rnn_forward.1} parent=0 // pred_check
    _
  $region27: #{encoder_rnn_forward.1} parent=0 // pred_check_branch
    %1270 = sbr.rel (0) target = $region29
  $region28: #{encoder_rnn_forward.1} parent=0 // pred_region
    _
  $region29: #{encoder_rnn_forward.1} parent=0 // pred_fallthru
    _
  // Predicated region
  $region30: #{encoder_rnn_forward.1} parent=0 // pred_check
    _
  $region31: #{encoder_rnn_forward.1} parent=0 // pred_check_branch
    %1272 = sbr.rel (0) target = $region33
  $region32: #{encoder_rnn_forward.1} parent=0 // pred_region
    _
  $region33: #{encoder_rnn_forward.1} parent=0 // pred_fallthru
    _

</llo_original>
